<compile_context>
chip_gen: v5e
topology: v5e:2x2
jax: 0.10.0
libtpu: 0.0.40
codegen_flags: <defaults>
</compile_context>

<pallas_src>
import math
from functools import partial

import jax
import jax.numpy as jnp
from jax.experimental import pallas as pl
from jax.experimental.pallas import tpu as pltpu


PER_LAYER_KEYS = ("wqkv", "bqkv", "wo", "bo", "w1", "b1", "w2", "b2",
                  "ln1g", "ln1b", "ln2g", "ln2b")
INVARIANT_KEYS = ("fng", "fnb", "wc1", "bc1", "wc2", "bc2", "wc3", "bc3")


def _layer_norm(h, g, b, eps=1e-5):
    mu = jnp.mean(h, axis=-1, keepdims=True)
    var = jnp.mean(jnp.square(h - mu), axis=-1, keepdims=True)
    return (h - mu) * jax.lax.rsqrt(var + eps) * g + b


def _transformer_kernel(num_heads, head_dim, tb, seq, compute_dtype,
                        x_ref,
                        wqkv_ref, bqkv_ref, wo_ref, bo_ref,
                        w1_ref, b1_ref, w2_ref, b2_ref,
                        ln1g_ref, ln1b_ref, ln2g_ref, ln2b_ref,
                        fng_ref, fnb_ref,
                        wc1_ref, bc1_ref, wc2_ref, bc2_ref, wc3_ref, bc3_ref,
                        out_ref, act_ref):
    D = num_heads * head_dim
    M = tb * seq
    scale = 1.0 / math.sqrt(head_dim)
    l = pl.program_id(1)

    def mm(a, w):
        # matmul in the weight's dtype (bf16 by default), f32 accumulation
        return jnp.dot(a.astype(w.dtype), w, preferred_element_type=jnp.float32)

    # Load the batch tile into the persistent activation scratch at layer 0.
    @pl.when(l == 0)
    def _init():
        act_ref[...] = x_ref[...].reshape(M, D)

    x2 = act_ref[...]                                         # (M, D) f32

    # ---- fused QKV projection over all tb*seq tokens ----
    qkv = mm(x2, wqkv_ref[...]) + bqkv_ref[...]               # (M, 3D)

    # ---- multi-head self attention (batched over the tb sequences) ----
    attn = jnp.zeros((M, D), jnp.float32)
    for h in range(num_heads):
        lo = h * head_dim
        qh = qkv[:, lo:lo + head_dim].reshape(tb, seq, head_dim)
        kh = qkv[:, D + lo:D + lo + head_dim].reshape(tb, seq, head_dim)
        vh = qkv[:, 2 * D + lo:2 * D + lo + head_dim].reshape(tb, seq, head_dim)
        s = jnp.einsum("bqd,bkd->bqk",
                       qh.astype(compute_dtype), kh.astype(compute_dtype),
                       preferred_element_type=jnp.float32) * scale
        s = s - jnp.max(s, axis=-1, keepdims=True)
        p = jnp.exp(s)
        p = p / jnp.sum(p, axis=-1, keepdims=True)
        ctx = jnp.einsum("bqk,bkd->bqd",
                         p.astype(compute_dtype), vh.astype(compute_dtype),
                         preferred_element_type=jnp.float32)  # (tb, S, hd)
        # accumulate each head straight into the output projection (no concat)
        attn = attn + mm(ctx.reshape(M, head_dim), wo_ref[lo:lo + head_dim, :])
    attn = attn + bo_ref[...]

    # ---- residual + norm1 (post-LN; dropout == identity) ----
    h1 = _layer_norm(x2 + attn, ln1g_ref[...], ln1b_ref[...])

    # ---- feed-forward (ReLU) ----
    ff = jnp.maximum(mm(h1, w1_ref[...]) + b1_ref[...], 0.0)
    ff = mm(ff, w2_ref[...]) + b2_ref[...]

    # ---- residual + norm2 ----
    h2 = _layer_norm(h1 + ff, ln2g_ref[...], ln2b_ref[...])
    act_ref[...] = h2

    # ---- final norm + mean-pool over sequence + classifier on last layer ----
    @pl.when(l == pl.num_programs(1) - 1)
    def _finalize():
        xf = _layer_norm(h2, fng_ref[...], fnb_ref[...])      # (M, D)
        pooled = jnp.mean(xf.reshape(tb, seq, D), axis=1)     # (tb, D)
        a1 = jnp.maximum(mm(pooled, wc1_ref[...]) + bc1_ref[...], 0.0)
        a2 = jnp.maximum(mm(a1, wc2_ref[...]) + bc2_ref[...], 0.0)
        logits = mm(a2, wc3_ref[...]) + bc3_ref[...]          # (tb, Cpad)
        out_ref[:, 0, :] = logits


def init_params(key, input_dim, ffn_embed_dim, num_layers, num_heads, num_classes):
    D = input_dim // num_heads * num_heads
    F = ffn_embed_dim
    L = num_layers
    ks = jax.random.split(key, 14)

    def rnd(k, shape, scale=0.05):
        return jax.random.normal(k, shape, jnp.float32) * scale

    return {
        # attention (weights stored as (in, out), i.e. pre-transposed)
        "wqkv": rnd(ks[0], (L, D, 3 * D)),
        "bqkv": rnd(ks[1], (L, 1, 3 * D)),
        "wo":   rnd(ks[2], (L, D, D)),
        "bo":   rnd(ks[3], (L, 1, D)),
        # FFN
        "w1":   rnd(ks[4], (L, D, F)),
        "b1":   rnd(ks[5], (L, 1, F)),
        "w2":   rnd(ks[6], (L, F, D)),
        "b2":   rnd(ks[7], (L, 1, D)),
        # per-layer LayerNorms
        "ln1g": jnp.ones((L, 1, D), jnp.float32),
        "ln1b": jnp.zeros((L, 1, D), jnp.float32),
        "ln2g": jnp.ones((L, 1, D), jnp.float32),
        "ln2b": jnp.zeros((L, 1, D), jnp.float32),
        # final encoder norm
        "fng":  jnp.ones((1, D), jnp.float32),
        "fnb":  jnp.zeros((1, D), jnp.float32),
        # classifier
        "wc1":  rnd(ks[8], (D, D // 2)),
        "bc1":  rnd(ks[9], (1, D // 2)),
        "wc2":  rnd(ks[10], (D // 2, D // 4)),
        "bc2":  rnd(ks[11], (1, D // 4)),
        "wc3":  rnd(ks[12], (D // 4, num_classes)),
        "bc3":  rnd(ks[13], (1, num_classes)),
    }


def vanilla_transformer_forward(x, params, *, num_heads,
                                batch_tile=None, matmul_dtype=jnp.bfloat16):
    # All model dims derived from (static) array shapes — no traced branching.
    L, D, _ = params["wqkv"].shape
    B, S, D_in = x.shape
    if D_in != D:                           # x = x[:, :, :self.input_dim]
        x = x[:, :, :D]
    x = x.astype(jnp.float32)

    C = params["wc3"].shape[1]
    Cp = max(128, -(-C // 128) * 128)       # pad classes to a 128-lane multiple

    p = dict(params)
    for k in ("wqkv", "wo", "w1", "w2", "wc1", "wc2"):
        p[k] = p[k].astype(matmul_dtype)    # halve weight DMA, bf16 MXU peak
    p["wc3"] = jnp.pad(params["wc3"], ((0, 0), (0, Cp - C))).astype(matmul_dtype)
    p["bc3"] = jnp.pad(params["bc3"], ((0, 0), (0, Cp - C)))

    # Batch tile: pack as many sequences as possible into the MXU M dimension.
    if batch_tile is None:
        tb = 1
        for cand in range(1, B + 1):
            if B % cand == 0 and cand * S <= 1024:
                tb = cand
    else:
        tb = batch_tile
    assert B % tb == 0, "batch_tile must divide batch size"
    nb = B // tb
    head_dim = D // num_heads

    per_layer_args = [p[k] for k in PER_LAYER_KEYS]
    invariant_args = [p[k] for k in INVARIANT_KEYS]

    def per_layer_spec(a):
        block = (None,) + tuple(a.shape[1:])
        zeros = (0,) * (a.ndim - 1)
        return pl.BlockSpec(block, lambda b, l: (l,) + zeros)

    def invariant_spec(a):
        zeros = (0,) * a.ndim
        return pl.BlockSpec(tuple(a.shape), lambda b, l: zeros)

    # VMEM budget: double-buffered per-layer weights + resident invariants +
    # activation scratch + I/O blocks (clamped to be safe on v5e..v7x).
    def nbytes(a):
        return int(a.size) * jnp.dtype(a.dtype).itemsize

    per_layer_bytes = sum(nbytes(a) // L for a in per_layer_args)
    invariant_bytes = sum(nbytes(a) for a in invariant_args)
    act_bytes = tb * S * D * 4
    io_bytes = tb * S * D * 4 + tb * Cp * 4
    est = 2 * (per_layer_bytes + invariant_bytes + io_bytes) + act_bytes + (1 << 20)
    vmem_limit = int(min(max(2 * est, 32 << 20), 64 << 20))

    kernel = partial(_transformer_kernel, num_heads, head_dim, tb, S, matmul_dtype)

    out = pl.pallas_call(
        kernel,
        out_shape=jax.ShapeDtypeStruct((B, 1, Cp), jnp.float32),
        grid=(nb, L),
        in_specs=[pl.BlockSpec((tb, S, D), lambda b, l: (b, 0, 0))]
                 + [per_layer_spec(a) for a in per_layer_args]
                 + [invariant_spec(a) for a in invariant_args],
        out_specs=pl.BlockSpec((tb, 1, Cp), lambda b, l: (b, 0, 0)),
        scratch_shapes=[pltpu.VMEM((tb * S, D), jnp.float32)],
        compiler_params=pltpu.CompilerParams(
            dimension_semantics=("parallel", "arbitrary"),
            vmem_limit_bytes=vmem_limit),
    )(x, *per_layer_args, *invariant_args)

    return out[:, 0, :C]                     # (B, num_classes)


if __name__ == "__main__":
    # small config: input_dim=34 -> effective d_model = 34 // 4 * 4 = 32
    input_dim = 34
    ffn_embed_dim = 64
    num_layers = 2
    num_heads = 4
    num_classes = 10
    B, S = 2, 8

    key = jax.random.PRNGKey(0)
    kx, kp = jax.random.split(key)
    x = jax.random.normal(kx, (B, S, input_dim), jnp.float32)
    params = init_params(kp, input_dim, ffn_embed_dim, num_layers, num_heads,
                         num_classes)

    fwd = jax.jit(partial(vanilla_transformer_forward, num_heads=num_heads))
    y = jax.block_until_ready(fwd(x, params))
    assert y.shape == (B, num_classes), y.shape
    assert bool(jnp.all(jnp.isfinite(y)))
    print("KERNEL_OK")
</pallas_src>

<mosaic_0001>
module attributes {stable_mosaic.version = 11 : i64} {
  func.func @_transformer_kernel(%arg0: i32, %arg1: i32, %arg2: memref<2x8x32xf32, #tpu.memory_space<vmem>>, %arg3: memref<1x32x96xbf16, #tpu.memory_space<vmem>>, %arg4: memref<1x1x96xf32, #tpu.memory_space<vmem>>, %arg5: memref<1x32x32xbf16, #tpu.memory_space<vmem>>, %arg6: memref<1x1x32xf32, #tpu.memory_space<vmem>>, %arg7: memref<1x32x64xbf16, #tpu.memory_space<vmem>>, %arg8: memref<1x1x64xf32, #tpu.memory_space<vmem>>, %arg9: memref<1x64x32xbf16, #tpu.memory_space<vmem>>, %arg10: memref<1x1x32xf32, #tpu.memory_space<vmem>>, %arg11: memref<1x1x32xf32, #tpu.memory_space<vmem>>, %arg12: memref<1x1x32xf32, #tpu.memory_space<vmem>>, %arg13: memref<1x1x32xf32, #tpu.memory_space<vmem>>, %arg14: memref<1x1x32xf32, #tpu.memory_space<vmem>>, %arg15: memref<1x32xf32, #tpu.memory_space<vmem>>, %arg16: memref<1x32xf32, #tpu.memory_space<vmem>>, %arg17: memref<32x16xbf16, #tpu.memory_space<vmem>>, %arg18: memref<1x16xf32, #tpu.memory_space<vmem>>, %arg19: memref<16x8xbf16, #tpu.memory_space<vmem>>, %arg20: memref<1x8xf32, #tpu.memory_space<vmem>>, %arg21: memref<8x128xbf16, #tpu.memory_space<vmem>>, %arg22: memref<1x128xf32, #tpu.memory_space<vmem>>, %arg23: memref<2x1x128xf32, #tpu.memory_space<vmem>>, %arg24: memref<16x32xf32, #tpu.memory_space<vmem>>) attributes {dimension_semantics = [#tpu.dimension_semantics<parallel>, #tpu.dimension_semantics<arbitrary>], iteration_bounds = array<i64: 1, 2>, scalar_prefetch = 0 : i64, scratch_operands = 1 : i64, tpu.core_type = #tpu.core_type<tc>, window_params = [{transform_indices = @transform_0, window_bounds = array<i64: 2, 8, 32>}, {transform_indices = @transform_1, window_bounds = array<i64: 1, 32, 96>}, {transform_indices = @transform_2, window_bounds = array<i64: 1, 1, 96>}, {transform_indices = @transform_3, window_bounds = array<i64: 1, 32, 32>}, {transform_indices = @transform_4, window_bounds = array<i64: 1, 1, 32>}, {transform_indices = @transform_5, window_bounds = array<i64: 1, 32, 64>}, {transform_indices = @transform_6, window_bounds = array<i64: 1, 1, 64>}, {transform_indices = @transform_7, window_bounds = array<i64: 1, 64, 32>}, {transform_indices = @transform_8, window_bounds = array<i64: 1, 1, 32>}, {transform_indices = @transform_9, window_bounds = array<i64: 1, 1, 32>}, {transform_indices = @transform_10, window_bounds = array<i64: 1, 1, 32>}, {transform_indices = @transform_11, window_bounds = array<i64: 1, 1, 32>}, {transform_indices = @transform_12, window_bounds = array<i64: 1, 1, 32>}, {pipeline_mode = #tpu.pipeline_mode<synchronous>, transform_indices = @transform_13, window_bounds = array<i64: 1, 32>}, {pipeline_mode = #tpu.pipeline_mode<synchronous>, transform_indices = @transform_14, window_bounds = array<i64: 1, 32>}, {pipeline_mode = #tpu.pipeline_mode<synchronous>, transform_indices = @transform_15, window_bounds = array<i64: 32, 16>}, {pipeline_mode = #tpu.pipeline_mode<synchronous>, transform_indices = @transform_16, window_bounds = array<i64: 1, 16>}, {pipeline_mode = #tpu.pipeline_mode<synchronous>, transform_indices = @transform_17, window_bounds = array<i64: 16, 8>}, {pipeline_mode = #tpu.pipeline_mode<synchronous>, transform_indices = @transform_18, window_bounds = array<i64: 1, 8>}, {pipeline_mode = #tpu.pipeline_mode<synchronous>, transform_indices = @transform_19, window_bounds = array<i64: 8, 128>}, {pipeline_mode = #tpu.pipeline_mode<synchronous>, transform_indices = @transform_20, window_bounds = array<i64: 1, 128>}, {transform_indices = @transform_21, window_bounds = array<i64: 2, 1, 128>}]} {
    %c0_i32 = arith.constant 0 : i32
    %0 = arith.cmpi eq, %arg1, %c0_i32 : i32
    %1 = arith.extui %0 : i1 to i32
    %c0_i32_0 = arith.constant 0 : i32
    %2 = arith.cmpi ne, %1, %c0_i32_0 : i32
    scf.if %2 {
      %c0_85 = arith.constant 0 : index
      %c0_86 = arith.constant 0 : index
      %c0_87 = arith.constant 0 : index
      %209 = vector.load %arg2[%c0_85, %c0_86, %c0_87] : memref<2x8x32xf32, #tpu.memory_space<vmem>>, vector<2x8x32xf32>
      %210 = vector.shape_cast %209 : vector<2x8x32xf32> to vector<16x32xf32>
      %c0_88 = arith.constant 0 : index
      %c0_89 = arith.constant 0 : index
      %211 = vector.load %arg24[%c0_88, %c0_89] : memref<16x32xf32, #tpu.memory_space<vmem>>, vector<16x32xf32>
      tpu.vector_store %arg24[%c0_88, %c0_89], %210 {strides = array<i32>} : memref<16x32xf32, #tpu.memory_space<vmem>>, vector<16x32xf32>,
    } else {
    }
    %c0 = arith.constant 0 : index
    %c0_1 = arith.constant 0 : index
    %3 = vector.load %arg24[%c0, %c0_1] : memref<16x32xf32, #tpu.memory_space<vmem>>, vector<16x32xf32>
    %c0_2 = arith.constant 0 : index
    %c0_3 = arith.constant 0 : index
    %c0_4 = arith.constant 0 : index
    %4 = vector.load %arg3[%c0_2, %c0_3, %c0_4] : memref<1x32x96xbf16, #tpu.memory_space<vmem>>, vector<1x32x96xbf16>
    %5 = vector.shape_cast %4 : vector<1x32x96xbf16> to vector<32x96xbf16>
    %6 = arith.truncf %3 : vector<16x32xf32> to vector<16x32xbf16>
    %cst = arith.constant dense<0.000000e+00> : vector<16x96xf32>
    %7 = tpu.matmul %6, %5, %cst {dimension_numbers = #tpu.dot_dimension_numbers<[1], [0], [0], [1], [0, 0, 1, 1], [], []>} : vector<16x32xbf16>, vector<32x96xbf16>, vector<16x96xf32> -> vector<16x96xf32>
    %c0_5 = arith.constant 0 : index
    %c0_6 = arith.constant 0 : index
    %c0_7 = arith.constant 0 : index
    %8 = vector.load %arg4[%c0_5, %c0_6, %c0_7] : memref<1x1x96xf32, #tpu.memory_space<vmem>>, vector<1x1x96xf32>
    %9 = vector.shape_cast %8 : vector<1x1x96xf32> to vector<1x96xf32>
    %10 = vector.broadcast %9 : vector<1x96xf32> to vector<16x96xf32>
    %11 = arith.addf %7, %10 : vector<16x96xf32>
    %cst_8 = arith.constant 0.000000e+00 : f32
    %12 = vector.broadcast %cst_8 : f32 to vector<16x32xf32>
    %13 = vector.extract_strided_slice %11 {offsets = [0, 0], sizes = [16, 8], strides = [1, 1]} : vector<16x96xf32> to vector<16x8xf32>
    %14 = vector.shape_cast %13 : vector<16x8xf32> to vector<2x8x8xf32>
    %15 = vector.extract_strided_slice %11 {offsets = [0, 32], sizes = [16, 8], strides = [1, 1]} : vector<16x96xf32> to vector<16x8xf32>
    %16 = vector.shape_cast %15 : vector<16x8xf32> to vector<2x8x8xf32>
    %17 = vector.extract_strided_slice %11 {offsets = [0, 64], sizes = [16, 8], strides = [1, 1]} : vector<16x96xf32> to vector<16x8xf32>
    %18 = vector.shape_cast %17 : vector<16x8xf32> to vector<2x8x8xf32>
    %19 = arith.truncf %14 : vector<2x8x8xf32> to vector<2x8x8xbf16>
    %20 = arith.truncf %16 : vector<2x8x8xf32> to vector<2x8x8xbf16>
    "tpu.trace_start"() <{level = 10 : i32, message = "bqd,bkd->bqk"}> : () -> ()
    %cst_9 = arith.constant dense<0.000000e+00> : vector<2x8x8xf32>
    %21 = tpu.matmul %19, %20, %cst_9 {dimension_numbers = #tpu.dot_dimension_numbers<[2], [2], [1], [1], [0, 0, 0, 1, 1, 1], [0], [0]>} : vector<2x8x8xbf16>, vector<2x8x8xbf16>, vector<2x8x8xf32> -> vector<2x8x8xf32>
    "tpu.trace_stop"() : () -> ()
    %cst_10 = arith.constant 0.353553385 : f32
    %22 = vector.broadcast %cst_10 : f32 to vector<2x8x8xf32>
    %23 = arith.mulf %21, %22 : vector<2x8x8xf32>
    %cst_11 = arith.constant dense<0xFF800000> : vector<2x8xf32>
    %24 = vector.multi_reduction <maximumf>, %23, %cst_11 [2] : vector<2x8x8xf32> to vector<2x8xf32>
    %25 = vector.shape_cast %24 : vector<2x8xf32> to vector<2x8x1xf32>
    %26 = vector.broadcast %25 : vector<2x8x1xf32> to vector<2x8x8xf32>
    %27 = arith.subf %23, %26 : vector<2x8x8xf32>
    %28 = math.exp %27 : vector<2x8x8xf32>
    %cst_12 = arith.constant dense<0.000000e+00> : vector<2x8xf32>
    %29 = vector.multi_reduction <add>, %28, %cst_12 [2] : vector<2x8x8xf32> to vector<2x8xf32>
    %30 = vector.shape_cast %29 : vector<2x8xf32> to vector<2x8x1xf32>
    %31 = vector.broadcast %30 : vector<2x8x1xf32> to vector<2x8x8xf32>
    %32 = arith.divf %28, %31 : vector<2x8x8xf32>
    %33 = arith.truncf %32 : vector<2x8x8xf32> to vector<2x8x8xbf16>
    %34 = arith.truncf %18 : vector<2x8x8xf32> to vector<2x8x8xbf16>
    "tpu.trace_start"() <{level = 10 : i32, message = "bqk,bkd->bqd"}> : () -> ()
    %cst_13 = arith.constant dense<0.000000e+00> : vector<2x8x8xf32>
    %35 = tpu.matmul %33, %34, %cst_13 {dimension_numbers = #tpu.dot_dimension_numbers<[2], [1], [1], [2], [0, 0, 0, 1, 1, 2], [0], [0]>} : vector<2x8x8xbf16>, vector<2x8x8xbf16>, vector<2x8x8xf32> -> vector<2x8x8xf32>
    "tpu.trace_stop"() : () -> ()
    %36 = vector.shape_cast %35 : vector<2x8x8xf32> to vector<16x8xf32>
    %c0_14 = arith.constant 0 : index
    %c0_15 = arith.constant 0 : index
    %c0_16 = arith.constant 0 : index
    %37 = vector.load %arg5[%c0_14, %c0_15, %c0_16] : memref<1x32x32xbf16, #tpu.memory_space<vmem>>, vector<1x8x32xbf16>
    %38 = vector.shape_cast %37 : vector<1x8x32xbf16> to vector<8x32xbf16>
    %39 = arith.truncf %36 : vector<16x8xf32> to vector<16x8xbf16>
    %cst_17 = arith.constant dense<0.000000e+00> : vector<16x32xf32>
    %40 = tpu.matmul %39, %38, %cst_17 {dimension_numbers = #tpu.dot_dimension_numbers<[1], [0], [0], [1], [0, 0, 1, 1], [], []>} : vector<16x8xbf16>, vector<8x32xbf16>, vector<16x32xf32> -> vector<16x32xf32>
    %41 = arith.addf %12, %40 : vector<16x32xf32>
    %42 = vector.extract_strided_slice %11 {offsets = [0, 8], sizes = [16, 8], strides = [1, 1]} : vector<16x96xf32> to vector<16x8xf32>
    %43 = vector.shape_cast %42 : vector<16x8xf32> to vector<2x8x8xf32>
    %44 = vector.extract_strided_slice %11 {offsets = [0, 40], sizes = [16, 8], strides = [1, 1]} : vector<16x96xf32> to vector<16x8xf32>
    %45 = vector.shape_cast %44 : vector<16x8xf32> to vector<2x8x8xf32>
    %46 = vector.extract_strided_slice %11 {offsets = [0, 72], sizes = [16, 8], strides = [1, 1]} : vector<16x96xf32> to vector<16x8xf32>
    %47 = vector.shape_cast %46 : vector<16x8xf32> to vector<2x8x8xf32>
    %48 = arith.truncf %43 : vector<2x8x8xf32> to vector<2x8x8xbf16>
    %49 = arith.truncf %45 : vector<2x8x8xf32> to vector<2x8x8xbf16>
    "tpu.trace_start"() <{level = 10 : i32, message = "bqd,bkd->bqk"}> : () -> ()
    %cst_18 = arith.constant dense<0.000000e+00> : vector<2x8x8xf32>
    %50 = tpu.matmul %48, %49, %cst_18 {dimension_numbers = #tpu.dot_dimension_numbers<[2], [2], [1], [1], [0, 0, 0, 1, 1, 1], [0], [0]>} : vector<2x8x8xbf16>, vector<2x8x8xbf16>, vector<2x8x8xf32> -> vector<2x8x8xf32>
    "tpu.trace_stop"() : () -> ()
    %cst_19 = arith.constant 0.353553385 : f32
    %51 = vector.broadcast %cst_19 : f32 to vector<2x8x8xf32>
    %52 = arith.mulf %50, %51 : vector<2x8x8xf32>
    %cst_20 = arith.constant dense<0xFF800000> : vector<2x8xf32>
    %53 = vector.multi_reduction <maximumf>, %52, %cst_20 [2] : vector<2x8x8xf32> to vector<2x8xf32>
    %54 = vector.shape_cast %53 : vector<2x8xf32> to vector<2x8x1xf32>
    %55 = vector.broadcast %54 : vector<2x8x1xf32> to vector<2x8x8xf32>
    %56 = arith.subf %52, %55 : vector<2x8x8xf32>
    %57 = math.exp %56 : vector<2x8x8xf32>
    %cst_21 = arith.constant dense<0.000000e+00> : vector<2x8xf32>
    %58 = vector.multi_reduction <add>, %57, %cst_21 [2] : vector<2x8x8xf32> to vector<2x8xf32>
    %59 = vector.shape_cast %58 : vector<2x8xf32> to vector<2x8x1xf32>
    %60 = vector.broadcast %59 : vector<2x8x1xf32> to vector<2x8x8xf32>
    %61 = arith.divf %57, %60 : vector<2x8x8xf32>
    %62 = arith.truncf %61 : vector<2x8x8xf32> to vector<2x8x8xbf16>
    %63 = arith.truncf %47 : vector<2x8x8xf32> to vector<2x8x8xbf16>
    "tpu.trace_start"() <{level = 10 : i32, message = "bqk,bkd->bqd"}> : () -> ()
    %cst_22 = arith.constant dense<0.000000e+00> : vector<2x8x8xf32>
    %64 = tpu.matmul %62, %63, %cst_22 {dimension_numbers = #tpu.dot_dimension_numbers<[2], [1], [1], [2], [0, 0, 0, 1, 1, 2], [0], [0]>} : vector<2x8x8xbf16>, vector<2x8x8xbf16>, vector<2x8x8xf32> -> vector<2x8x8xf32>
    "tpu.trace_stop"() : () -> ()
    %65 = vector.shape_cast %64 : vector<2x8x8xf32> to vector<16x8xf32>
    %c0_23 = arith.constant 0 : index
    %c8 = arith.constant 8 : index
    %c0_24 = arith.constant 0 : index
    %66 = vector.load %arg5[%c0_23, %c8, %c0_24] : memref<1x32x32xbf16, #tpu.memory_space<vmem>>, vector<1x8x32xbf16>
    %67 = vector.shape_cast %66 : vector<1x8x32xbf16> to vector<8x32xbf16>
    %68 = arith.truncf %65 : vector<16x8xf32> to vector<16x8xbf16>
    %cst_25 = arith.constant dense<0.000000e+00> : vector<16x32xf32>
    %69 = tpu.matmul %68, %67, %cst_25 {dimension_numbers = #tpu.dot_dimension_numbers<[1], [0], [0], [1], [0, 0, 1, 1], [], []>} : vector<16x8xbf16>, vector<8x32xbf16>, vector<16x32xf32> -> vector<16x32xf32>
    %70 = arith.addf %41, %69 : vector<16x32xf32>
    %71 = vector.extract_strided_slice %11 {offsets = [0, 16], sizes = [16, 8], strides = [1, 1]} : vector<16x96xf32> to vector<16x8xf32>
    %72 = vector.shape_cast %71 : vector<16x8xf32> to vector<2x8x8xf32>
    %73 = vector.extract_strided_slice %11 {offsets = [0, 48], sizes = [16, 8], strides = [1, 1]} : vector<16x96xf32> to vector<16x8xf32>
    %74 = vector.shape_cast %73 : vector<16x8xf32> to vector<2x8x8xf32>
    %75 = vector.extract_strided_slice %11 {offsets = [0, 80], sizes = [16, 8], strides = [1, 1]} : vector<16x96xf32> to vector<16x8xf32>
    %76 = vector.shape_cast %75 : vector<16x8xf32> to vector<2x8x8xf32>
    %77 = arith.truncf %72 : vector<2x8x8xf32> to vector<2x8x8xbf16>
    %78 = arith.truncf %74 : vector<2x8x8xf32> to vector<2x8x8xbf16>
    "tpu.trace_start"() <{level = 10 : i32, message = "bqd,bkd->bqk"}> : () -> ()
    %cst_26 = arith.constant dense<0.000000e+00> : vector<2x8x8xf32>
    %79 = tpu.matmul %77, %78, %cst_26 {dimension_numbers = #tpu.dot_dimension_numbers<[2], [2], [1], [1], [0, 0, 0, 1, 1, 1], [0], [0]>} : vector<2x8x8xbf16>, vector<2x8x8xbf16>, vector<2x8x8xf32> -> vector<2x8x8xf32>
    "tpu.trace_stop"() : () -> ()
    %cst_27 = arith.constant 0.353553385 : f32
    %80 = vector.broadcast %cst_27 : f32 to vector<2x8x8xf32>
    %81 = arith.mulf %79, %80 : vector<2x8x8xf32>
    %cst_28 = arith.constant dense<0xFF800000> : vector<2x8xf32>
    %82 = vector.multi_reduction <maximumf>, %81, %cst_28 [2] : vector<2x8x8xf32> to vector<2x8xf32>
    %83 = vector.shape_cast %82 : vector<2x8xf32> to vector<2x8x1xf32>
    %84 = vector.broadcast %83 : vector<2x8x1xf32> to vector<2x8x8xf32>
    %85 = arith.subf %81, %84 : vector<2x8x8xf32>
    %86 = math.exp %85 : vector<2x8x8xf32>
    %cst_29 = arith.constant dense<0.000000e+00> : vector<2x8xf32>
    %87 = vector.multi_reduction <add>, %86, %cst_29 [2] : vector<2x8x8xf32> to vector<2x8xf32>
    %88 = vector.shape_cast %87 : vector<2x8xf32> to vector<2x8x1xf32>
    %89 = vector.broadcast %88 : vector<2x8x1xf32> to vector<2x8x8xf32>
    %90 = arith.divf %86, %89 : vector<2x8x8xf32>
    %91 = arith.truncf %90 : vector<2x8x8xf32> to vector<2x8x8xbf16>
    %92 = arith.truncf %76 : vector<2x8x8xf32> to vector<2x8x8xbf16>
    "tpu.trace_start"() <{level = 10 : i32, message = "bqk,bkd->bqd"}> : () -> ()
    %cst_30 = arith.constant dense<0.000000e+00> : vector<2x8x8xf32>
    %93 = tpu.matmul %91, %92, %cst_30 {dimension_numbers = #tpu.dot_dimension_numbers<[2], [1], [1], [2], [0, 0, 0, 1, 1, 2], [0], [0]>} : vector<2x8x8xbf16>, vector<2x8x8xbf16>, vector<2x8x8xf32> -> vector<2x8x8xf32>
    "tpu.trace_stop"() : () -> ()
    %94 = vector.shape_cast %93 : vector<2x8x8xf32> to vector<16x8xf32>
    %c0_31 = arith.constant 0 : index
    %c16 = arith.constant 16 : index
    %c0_32 = arith.constant 0 : index
    %95 = vector.load %arg5[%c0_31, %c16, %c0_32] : memref<1x32x32xbf16, #tpu.memory_space<vmem>>, vector<1x8x32xbf16>
    %96 = vector.shape_cast %95 : vector<1x8x32xbf16> to vector<8x32xbf16>
    %97 = arith.truncf %94 : vector<16x8xf32> to vector<16x8xbf16>
    %cst_33 = arith.constant dense<0.000000e+00> : vector<16x32xf32>
    %98 = tpu.matmul %97, %96, %cst_33 {dimension_numbers = #tpu.dot_dimension_numbers<[1], [0], [0], [1], [0, 0, 1, 1], [], []>} : vector<16x8xbf16>, vector<8x32xbf16>, vector<16x32xf32> -> vector<16x32xf32>
    %99 = arith.addf %70, %98 : vector<16x32xf32>
    %100 = vector.extract_strided_slice %11 {offsets = [0, 24], sizes = [16, 8], strides = [1, 1]} : vector<16x96xf32> to vector<16x8xf32>
    %101 = vector.shape_cast %100 : vector<16x8xf32> to vector<2x8x8xf32>
    %102 = vector.extract_strided_slice %11 {offsets = [0, 56], sizes = [16, 8], strides = [1, 1]} : vector<16x96xf32> to vector<16x8xf32>
    %103 = vector.shape_cast %102 : vector<16x8xf32> to vector<2x8x8xf32>
    %104 = vector.extract_strided_slice %11 {offsets = [0, 88], sizes = [16, 8], strides = [1, 1]} : vector<16x96xf32> to vector<16x8xf32>
    %105 = vector.shape_cast %104 : vector<16x8xf32> to vector<2x8x8xf32>
    %106 = arith.truncf %101 : vector<2x8x8xf32> to vector<2x8x8xbf16>
    %107 = arith.truncf %103 : vector<2x8x8xf32> to vector<2x8x8xbf16>
    "tpu.trace_start"() <{level = 10 : i32, message = "bqd,bkd->bqk"}> : () -> ()
    %cst_34 = arith.constant dense<0.000000e+00> : vector<2x8x8xf32>
    %108 = tpu.matmul %106, %107, %cst_34 {dimension_numbers = #tpu.dot_dimension_numbers<[2], [2], [1], [1], [0, 0, 0, 1, 1, 1], [0], [0]>} : vector<2x8x8xbf16>, vector<2x8x8xbf16>, vector<2x8x8xf32> -> vector<2x8x8xf32>
    "tpu.trace_stop"() : () -> ()
    %cst_35 = arith.constant 0.353553385 : f32
    %109 = vector.broadcast %cst_35 : f32 to vector<2x8x8xf32>
    %110 = arith.mulf %108, %109 : vector<2x8x8xf32>
    %cst_36 = arith.constant dense<0xFF800000> : vector<2x8xf32>
    %111 = vector.multi_reduction <maximumf>, %110, %cst_36 [2] : vector<2x8x8xf32> to vector<2x8xf32>
    %112 = vector.shape_cast %111 : vector<2x8xf32> to vector<2x8x1xf32>
    %113 = vector.broadcast %112 : vector<2x8x1xf32> to vector<2x8x8xf32>
    %114 = arith.subf %110, %113 : vector<2x8x8xf32>
    %115 = math.exp %114 : vector<2x8x8xf32>
    %cst_37 = arith.constant dense<0.000000e+00> : vector<2x8xf32>
    %116 = vector.multi_reduction <add>, %115, %cst_37 [2] : vector<2x8x8xf32> to vector<2x8xf32>
    %117 = vector.shape_cast %116 : vector<2x8xf32> to vector<2x8x1xf32>
    %118 = vector.broadcast %117 : vector<2x8x1xf32> to vector<2x8x8xf32>
    %119 = arith.divf %115, %118 : vector<2x8x8xf32>
    %120 = arith.truncf %119 : vector<2x8x8xf32> to vector<2x8x8xbf16>
    %121 = arith.truncf %105 : vector<2x8x8xf32> to vector<2x8x8xbf16>
    "tpu.trace_start"() <{level = 10 : i32, message = "bqk,bkd->bqd"}> : () -> ()
    %cst_38 = arith.constant dense<0.000000e+00> : vector<2x8x8xf32>
    %122 = tpu.matmul %120, %121, %cst_38 {dimension_numbers = #tpu.dot_dimension_numbers<[2], [1], [1], [2], [0, 0, 0, 1, 1, 2], [0], [0]>} : vector<2x8x8xbf16>, vector<2x8x8xbf16>, vector<2x8x8xf32> -> vector<2x8x8xf32>
    "tpu.trace_stop"() : () -> ()
    %123 = vector.shape_cast %122 : vector<2x8x8xf32> to vector<16x8xf32>
    %c0_39 = arith.constant 0 : index
    %c24 = arith.constant 24 : index
    %c0_40 = arith.constant 0 : index
    %124 = vector.load %arg5[%c0_39, %c24, %c0_40] : memref<1x32x32xbf16, #tpu.memory_space<vmem>>, vector<1x8x32xbf16>
    %125 = vector.shape_cast %124 : vector<1x8x32xbf16> to vector<8x32xbf16>
    %126 = arith.truncf %123 : vector<16x8xf32> to vector<16x8xbf16>
    %cst_41 = arith.constant dense<0.000000e+00> : vector<16x32xf32>
    %127 = tpu.matmul %126, %125, %cst_41 {dimension_numbers = #tpu.dot_dimension_numbers<[1], [0], [0], [1], [0, 0, 1, 1], [], []>} : vector<16x8xbf16>, vector<8x32xbf16>, vector<16x32xf32> -> vector<16x32xf32>
    %128 = arith.addf %99, %127 : vector<16x32xf32>
    %c0_42 = arith.constant 0 : index
    %c0_43 = arith.constant 0 : index
    %c0_44 = arith.constant 0 : index
    %129 = vector.load %arg6[%c0_42, %c0_43, %c0_44] : memref<1x1x32xf32, #tpu.memory_space<vmem>>, vector<1x1x32xf32>
    %130 = vector.shape_cast %129 : vector<1x1x32xf32> to vector<1x32xf32>
    %131 = vector.broadcast %130 : vector<1x32xf32> to vector<16x32xf32>
    %132 = arith.addf %128, %131 : vector<16x32xf32>
    %133 = arith.addf %3, %132 : vector<16x32xf32>
    %c0_45 = arith.constant 0 : index
    %c0_46 = arith.constant 0 : index
    %c0_47 = arith.constant 0 : index
    %134 = vector.load %arg11[%c0_45, %c0_46, %c0_47] : memref<1x1x32xf32, #tpu.memory_space<vmem>>, vector<1x1x32xf32>
    %135 = vector.shape_cast %134 : vector<1x1x32xf32> to vector<1x32xf32>
    %c0_48 = arith.constant 0 : index
    %c0_49 = arith.constant 0 : index
    %c0_50 = arith.constant 0 : index
    %136 = vector.load %arg12[%c0_48, %c0_49, %c0_50] : memref<1x1x32xf32, #tpu.memory_space<vmem>>, vector<1x1x32xf32>
    %137 = vector.shape_cast %136 : vector<1x1x32xf32> to vector<1x32xf32>
    %cst_51 = arith.constant dense<0.000000e+00> : vector<16xf32>
    %138 = vector.multi_reduction <add>, %133, %cst_51 [1] : vector<16x32xf32> to vector<16xf32>
    %139 = vector.shape_cast %138 : vector<16xf32> to vector<16x1xf32>
    %cst_52 = arith.constant 3.200000e+01 : f32
    %140 = vector.broadcast %cst_52 : f32 to vector<16x1xf32>
    %141 = arith.divf %139, %140 : vector<16x1xf32>
    %142 = vector.broadcast %141 : vector<16x1xf32> to vector<16x32xf32>
    %143 = arith.subf %133, %142 : vector<16x32xf32>
    %144 = arith.mulf %143, %143 : vector<16x32xf32>
    %cst_53 = arith.constant dense<0.000000e+00> : vector<16xf32>
    %145 = vector.multi_reduction <add>, %144, %cst_53 [1] : vector<16x32xf32> to vector<16xf32>
    %146 = vector.shape_cast %145 : vector<16xf32> to vector<16x1xf32>
    %cst_54 = arith.constant 3.200000e+01 : f32
    %147 = vector.broadcast %cst_54 : f32 to vector<16x1xf32>
    %148 = arith.divf %146, %147 : vector<16x1xf32>
    %149 = vector.broadcast %141 : vector<16x1xf32> to vector<16x32xf32>
    %150 = arith.subf %133, %149 : vector<16x32xf32>
    %cst_55 = arith.constant 9.99999974E-6 : f32
    %151 = vector.broadcast %cst_55 : f32 to vector<16x1xf32>
    %152 = arith.addf %148, %151 : vector<16x1xf32>
    %153 = math.rsqrt %152 : vector<16x1xf32>
    %154 = vector.broadcast %153 : vector<16x1xf32> to vector<16x32xf32>
    %155 = arith.mulf %150, %154 : vector<16x32xf32>
    %156 = vector.broadcast %135 : vector<1x32xf32> to vector<16x32xf32>
    %157 = arith.mulf %155, %156 : vector<16x32xf32>
    %158 = vector.broadcast %137 : vector<1x32xf32> to vector<16x32xf32>
    %159 = arith.addf %157, %158 : vector<16x32xf32>
    %c0_56 = arith.constant 0 : index
    %c0_57 = arith.constant 0 : index
    %c0_58 = arith.constant 0 : index
    %160 = vector.load %arg7[%c0_56, %c0_57, %c0_58] : memref<1x32x64xbf16, #tpu.memory_space<vmem>>, vector<1x32x64xbf16>
    %161 = vector.shape_cast %160 : vector<1x32x64xbf16> to vector<32x64xbf16>
    %162 = arith.truncf %159 : vector<16x32xf32> to vector<16x32xbf16>
    %cst_59 = arith.constant dense<0.000000e+00> : vector<16x64xf32>
    %163 = tpu.matmul %162, %161, %cst_59 {dimension_numbers = #tpu.dot_dimension_numbers<[1], [0], [0], [1], [0, 0, 1, 1], [], []>} : vector<16x32xbf16>, vector<32x64xbf16>, vector<16x64xf32> -> vector<16x64xf32>
    %c0_60 = arith.constant 0 : index
    %c0_61 = arith.constant 0 : index
    %c0_62 = arith.constant 0 : index
    %164 = vector.load %arg8[%c0_60, %c0_61, %c0_62] : memref<1x1x64xf32, #tpu.memory_space<vmem>>, vector<1x1x64xf32>
    %165 = vector.shape_cast %164 : vector<1x1x64xf32> to vector<1x64xf32>
    %166 = vector.broadcast %165 : vector<1x64xf32> to vector<16x64xf32>
    %167 = arith.addf %163, %166 : vector<16x64xf32>
    %cst_63 = arith.constant 0.000000e+00 : f32
    %168 = vector.broadcast %cst_63 : f32 to vector<16x64xf32>
    %169 = arith.maximumf %167, %168 : vector<16x64xf32>
    %c0_64 = arith.constant 0 : index
    %c0_65 = arith.constant 0 : index
    %c0_66 = arith.constant 0 : index
    %170 = vector.load %arg9[%c0_64, %c0_65, %c0_66] : memref<1x64x32xbf16, #tpu.memory_space<vmem>>, vector<1x64x32xbf16>
    %171 = vector.shape_cast %170 : vector<1x64x32xbf16> to vector<64x32xbf16>
    %172 = arith.truncf %169 : vector<16x64xf32> to vector<16x64xbf16>
    %cst_67 = arith.constant dense<0.000000e+00> : vector<16x32xf32>
    %173 = tpu.matmul %172, %171, %cst_67 {dimension_numbers = #tpu.dot_dimension_numbers<[1], [0], [0], [1], [0, 0, 1, 1], [], []>} : vector<16x64xbf16>, vector<64x32xbf16>, vector<16x32xf32> -> vector<16x32xf32>
    %c0_68 = arith.constant 0 : index
    %c0_69 = arith.constant 0 : index
    %c0_70 = arith.constant 0 : index
    %174 = vector.load %arg10[%c0_68, %c0_69, %c0_70] : memref<1x1x32xf32, #tpu.memory_space<vmem>>, vector<1x1x32xf32>
    %175 = vector.shape_cast %174 : vector<1x1x32xf32> to vector<1x32xf32>
    %176 = vector.broadcast %175 : vector<1x32xf32> to vector<16x32xf32>
    %177 = arith.addf %173, %176 : vector<16x32xf32>
    %178 = arith.addf %159, %177 : vector<16x32xf32>
    %c0_71 = arith.constant 0 : index
    %c0_72 = arith.constant 0 : index
    %c0_73 = arith.constant 0 : index
    %179 = vector.load %arg13[%c0_71, %c0_72, %c0_73] : memref<1x1x32xf32, #tpu.memory_space<vmem>>, vector<1x1x32xf32>
    %180 = vector.shape_cast %179 : vector<1x1x32xf32> to vector<1x32xf32>
    %c0_74 = arith.constant 0 : index
    %c0_75 = arith.constant 0 : index
    %c0_76 = arith.constant 0 : index
    %181 = vector.load %arg14[%c0_74, %c0_75, %c0_76] : memref<1x1x32xf32, #tpu.memory_space<vmem>>, vector<1x1x32xf32>
    %182 = vector.shape_cast %181 : vector<1x1x32xf32> to vector<1x32xf32>
    %cst_77 = arith.constant dense<0.000000e+00> : vector<16xf32>
    %183 = vector.multi_reduction <add>, %178, %cst_77 [1] : vector<16x32xf32> to vector<16xf32>
    %184 = vector.shape_cast %183 : vector<16xf32> to vector<16x1xf32>
    %cst_78 = arith.constant 3.200000e+01 : f32
    %185 = vector.broadcast %cst_78 : f32 to vector<16x1xf32>
    %186 = arith.divf %184, %185 : vector<16x1xf32>
    %187 = vector.broadcast %186 : vector<16x1xf32> to vector<16x32xf32>
    %188 = arith.subf %178, %187 : vector<16x32xf32>
    %189 = arith.mulf %188, %188 : vector<16x32xf32>
    %cst_79 = arith.constant dense<0.000000e+00> : vector<16xf32>
    %190 = vector.multi_reduction <add>, %189, %cst_79 [1] : vector<16x32xf32> to vector<16xf32>
    %191 = vector.shape_cast %190 : vector<16xf32> to vector<16x1xf32>
    %cst_80 = arith.constant 3.200000e+01 : f32
    %192 = vector.broadcast %cst_80 : f32 to vector<16x1xf32>
    %193 = arith.divf %191, %192 : vector<16x1xf32>
    %194 = vector.broadcast %186 : vector<16x1xf32> to vector<16x32xf32>
    %195 = arith.subf %178, %194 : vector<16x32xf32>
    %cst_81 = arith.constant 9.99999974E-6 : f32
    %196 = vector.broadcast %cst_81 : f32 to vector<16x1xf32>
    %197 = arith.addf %193, %196 : vector<16x1xf32>
    %198 = math.rsqrt %197 : vector<16x1xf32>
    %199 = vector.broadcast %198 : vector<16x1xf32> to vector<16x32xf32>
    %200 = arith.mulf %195, %199 : vector<16x32xf32>
    %201 = vector.broadcast %180 : vector<1x32xf32> to vector<16x32xf32>
    %202 = arith.mulf %200, %201 : vector<16x32xf32>
    %203 = vector.broadcast %182 : vector<1x32xf32> to vector<16x32xf32>
    %204 = arith.addf %202, %203 : vector<16x32xf32>
    %c0_82 = arith.constant 0 : index
    %c0_83 = arith.constant 0 : index
    %205 = vector.load %arg24[%c0_82, %c0_83] : memref<16x32xf32, #tpu.memory_space<vmem>>, vector<16x32xf32>
    tpu.vector_store %arg24[%c0_82, %c0_83], %204 {strides = array<i32>} : memref<16x32xf32, #tpu.memory_space<vmem>>, vector<16x32xf32>,
    %c1_i32 = arith.constant 1 : i32
    %206 = arith.cmpi eq, %arg1, %c1_i32 : i32
    %207 = arith.extui %206 : i1 to i32
    %c0_i32_84 = arith.constant 0 : i32
    %208 = arith.cmpi ne, %207, %c0_i32_84 : i32
    scf.if %208 {
      %c0_85 = arith.constant 0 : index
      %c0_86 = arith.constant 0 : index
      %209 = vector.load %arg15[%c0_85, %c0_86] : memref<1x32xf32, #tpu.memory_space<vmem>>, vector<1x32xf32>
      %c0_87 = arith.constant 0 : index
      %c0_88 = arith.constant 0 : index
      %210 = vector.load %arg16[%c0_87, %c0_88] : memref<1x32xf32, #tpu.memory_space<vmem>>, vector<1x32xf32>
      %cst_89 = arith.constant dense<0.000000e+00> : vector<16xf32>
      %211 = vector.multi_reduction <add>, %204, %cst_89 [1] : vector<16x32xf32> to vector<16xf32>
      %212 = vector.shape_cast %211 : vector<16xf32> to vector<16x1xf32>
      %cst_90 = arith.constant 3.200000e+01 : f32
      %213 = vector.broadcast %cst_90 : f32 to vector<16x1xf32>
      %214 = arith.divf %212, %213 : vector<16x1xf32>
      %215 = vector.broadcast %214 : vector<16x1xf32> to vector<16x32xf32>
      %216 = arith.subf %204, %215 : vector<16x32xf32>
      %217 = arith.mulf %216, %216 : vector<16x32xf32>
      %cst_91 = arith.constant dense<0.000000e+00> : vector<16xf32>
      %218 = vector.multi_reduction <add>, %217, %cst_91 [1] : vector<16x32xf32> to vector<16xf32>
      %219 = vector.shape_cast %218 : vector<16xf32> to vector<16x1xf32>
      %cst_92 = arith.constant 3.200000e+01 : f32
      %220 = vector.broadcast %cst_92 : f32 to vector<16x1xf32>
      %221 = arith.divf %219, %220 : vector<16x1xf32>
      %222 = vector.broadcast %214 : vector<16x1xf32> to vector<16x32xf32>
      %223 = arith.subf %204, %222 : vector<16x32xf32>
      %cst_93 = arith.constant 9.99999974E-6 : f32
      %224 = vector.broadcast %cst_93 : f32 to vector<16x1xf32>
      %225 = arith.addf %221, %224 : vector<16x1xf32>
      %226 = math.rsqrt %225 : vector<16x1xf32>
      %227 = vector.broadcast %226 : vector<16x1xf32> to vector<16x32xf32>
      %228 = arith.mulf %223, %227 : vector<16x32xf32>
      %229 = vector.broadcast %209 : vector<1x32xf32> to vector<16x32xf32>
      %230 = arith.mulf %228, %229 : vector<16x32xf32>
      %231 = vector.broadcast %210 : vector<1x32xf32> to vector<16x32xf32>
      %232 = arith.addf %230, %231 : vector<16x32xf32>
      %233 = vector.shape_cast %232 : vector<16x32xf32> to vector<2x8x32xf32>
      %cst_94 = arith.constant dense<0.000000e+00> : vector<2x32xf32>
      %234 = vector.multi_reduction <add>, %233, %cst_94 [1] : vector<2x8x32xf32> to vector<2x32xf32>
      %cst_95 = arith.constant 8.000000e+00 : f32
      %235 = vector.broadcast %cst_95 : f32 to vector<2x32xf32>
      %236 = arith.divf %234, %235 : vector<2x32xf32>
      %c0_96 = arith.constant 0 : index
      %c0_97 = arith.constant 0 : index
      %237 = vector.load %arg17[%c0_96, %c0_97] : memref<32x16xbf16, #tpu.memory_space<vmem>>, vector<32x16xbf16>
      %238 = arith.truncf %236 : vector<2x32xf32> to vector<2x32xbf16>
      %cst_98 = arith.constant dense<0.000000e+00> : vector<2x16xf32>
      %239 = tpu.matmul %238, %237, %cst_98 {dimension_numbers = #tpu.dot_dimension_numbers<[1], [0], [0], [1], [0, 0, 1, 1], [], []>} : vector<2x32xbf16>, vector<32x16xbf16>, vector<2x16xf32> -> vector<2x16xf32>
      %c0_99 = arith.constant 0 : index
      %c0_100 = arith.constant 0 : index
      %240 = vector.load %arg18[%c0_99, %c0_100] : memref<1x16xf32, #tpu.memory_space<vmem>>, vector<1x16xf32>
      %241 = vector.broadcast %240 : vector<1x16xf32> to vector<2x16xf32>
      %242 = arith.addf %239, %241 : vector<2x16xf32>
      %cst_101 = arith.constant 0.000000e+00 : f32
      %243 = vector.broadcast %cst_101 : f32 to vector<2x16xf32>
      %244 = arith.maximumf %242, %243 : vector<2x16xf32>
      %c0_102 = arith.constant 0 : index
      %c0_103 = arith.constant 0 : index
      %245 = vector.load %arg19[%c0_102, %c0_103] : memref<16x8xbf16, #tpu.memory_space<vmem>>, vector<16x8xbf16>
      %246 = arith.truncf %244 : vector<2x16xf32> to vector<2x16xbf16>
      %cst_104 = arith.constant dense<0.000000e+00> : vector<2x8xf32>
      %247 = tpu.matmul %246, %245, %cst_104 {dimension_numbers = #tpu.dot_dimension_numbers<[1], [0], [0], [1], [0, 0, 1, 1], [], []>} : vector<2x16xbf16>, vector<16x8xbf16>, vector<2x8xf32> -> vector<2x8xf32>
      %c0_105 = arith.constant 0 : index
      %c0_106 = arith.constant 0 : index
      %248 = vector.load %arg20[%c0_105, %c0_106] : memref<1x8xf32, #tpu.memory_space<vmem>>, vector<1x8xf32>
      %249 = vector.broadcast %248 : vector<1x8xf32> to vector<2x8xf32>
      %250 = arith.addf %247, %249 : vector<2x8xf32>
      %cst_107 = arith.constant 0.000000e+00 : f32
      %251 = vector.broadcast %cst_107 : f32 to vector<2x8xf32>
      %252 = arith.maximumf %250, %251 : vector<2x8xf32>
      %c0_108 = arith.constant 0 : index
      %c0_109 = arith.constant 0 : index
      %253 = vector.load %arg21[%c0_108, %c0_109] : memref<8x128xbf16, #tpu.memory_space<vmem>>, vector<8x128xbf16>
      %254 = arith.truncf %252 : vector<2x8xf32> to vector<2x8xbf16>
      %cst_110 = arith.constant dense<0.000000e+00> : vector<2x128xf32>
      %255 = tpu.matmul %254, %253, %cst_110 {dimension_numbers = #tpu.dot_dimension_numbers<[1], [0], [0], [1], [0, 0, 1, 1], [], []>} : vector<2x8xbf16>, vector<8x128xbf16>, vector<2x128xf32> -> vector<2x128xf32>
      %c0_111 = arith.constant 0 : index
      %c0_112 = arith.constant 0 : index
      %256 = vector.load %arg22[%c0_111, %c0_112] : memref<1x128xf32, #tpu.memory_space<vmem>>, vector<1x128xf32>
      %257 = vector.broadcast %256 : vector<1x128xf32> to vector<2x128xf32>
      %258 = arith.addf %255, %257 : vector<2x128xf32>
      %c0_113 = arith.constant 0 : index
      %c0_114 = arith.constant 0 : index
      %c0_115 = arith.constant 0 : index
      %259 = vector.load %arg23[%c0_113, %c0_114, %c0_115] : memref<2x1x128xf32, #tpu.memory_space<vmem>>, vector<2x1x128xf32>
      %260 = vector.shape_cast %259 : vector<2x1x128xf32> to vector<2x128xf32>
      %261 = vector.shape_cast %258 : vector<2x128xf32> to vector<2x1x128xf32>
      tpu.vector_store %arg23[%c0_113, %c0_114, %c0_115], %261 {strides = array<i32>} : memref<2x1x128xf32, #tpu.memory_space<vmem>>, vector<2x1x128xf32>,
    } else {
    }
    return
  }
  func.func @transform_0(%arg0: i32, %arg1: i32) -> (i32, i32, i32) {
    %c0_i32 = arith.constant 0 : i32
    %c0_i32_0 = arith.constant 0 : i32
    %c0_i32_1 = arith.constant 0 : i32
    return %arg0, %c0_i32, %c0_i32_0 : i32, i32, i32
  }
  func.func @transform_1(%arg0: i32, %arg1: i32) -> (i32, i32, i32) {
    %c0_i32 = arith.constant 0 : i32
    %c0_i32_0 = arith.constant 0 : i32
    %c0_i32_1 = arith.constant 0 : i32
    return %arg1, %c0_i32, %c0_i32_0 : i32, i32, i32
  }
  func.func @transform_2(%arg0: i32, %arg1: i32) -> (i32, i32, i32) {
    %c0_i32 = arith.constant 0 : i32
    %c0_i32_0 = arith.constant 0 : i32
    %c0_i32_1 = arith.constant 0 : i32
    return %arg1, %c0_i32, %c0_i32_0 : i32, i32, i32
  }
  func.func @transform_3(%arg0: i32, %arg1: i32) -> (i32, i32, i32) {
    %c0_i32 = arith.constant 0 : i32
    %c0_i32_0 = arith.constant 0 : i32
    %c0_i32_1 = arith.constant 0 : i32
    return %arg1, %c0_i32, %c0_i32_0 : i32, i32, i32
  }
  func.func @transform_4(%arg0: i32, %arg1: i32) -> (i32, i32, i32) {
    %c0_i32 = arith.constant 0 : i32
    %c0_i32_0 = arith.constant 0 : i32
    %c0_i32_1 = arith.constant 0 : i32
    return %arg1, %c0_i32, %c0_i32_0 : i32, i32, i32
  }
  func.func @transform_5(%arg0: i32, %arg1: i32) -> (i32, i32, i32) {
    %c0_i32 = arith.constant 0 : i32
    %c0_i32_0 = arith.constant 0 : i32
    %c0_i32_1 = arith.constant 0 : i32
    return %arg1, %c0_i32, %c0_i32_0 : i32, i32, i32
  }
  func.func @transform_6(%arg0: i32, %arg1: i32) -> (i32, i32, i32) {
    %c0_i32 = arith.constant 0 : i32
    %c0_i32_0 = arith.constant 0 : i32
    %c0_i32_1 = arith.constant 0 : i32
    return %arg1, %c0_i32, %c0_i32_0 : i32, i32, i32
  }
  func.func @transform_7(%arg0: i32, %arg1: i32) -> (i32, i32, i32) {
    %c0_i32 = arith.constant 0 : i32
    %c0_i32_0 = arith.constant 0 : i32
    %c0_i32_1 = arith.constant 0 : i32
    return %arg1, %c0_i32, %c0_i32_0 : i32, i32, i32
  }
  func.func @transform_8(%arg0: i32, %arg1: i32) -> (i32, i32, i32) {
    %c0_i32 = arith.constant 0 : i32
    %c0_i32_0 = arith.constant 0 : i32
    %c0_i32_1 = arith.constant 0 : i32
    return %arg1, %c0_i32, %c0_i32_0 : i32, i32, i32
  }
  func.func @transform_9(%arg0: i32, %arg1: i32) -> (i32, i32, i32) {
    %c0_i32 = arith.constant 0 : i32
    %c0_i32_0 = arith.constant 0 : i32
    %c0_i32_1 = arith.constant 0 : i32
    return %arg1, %c0_i32, %c0_i32_0 : i32, i32, i32
  }
  func.func @transform_10(%arg0: i32, %arg1: i32) -> (i32, i32, i32) {
    %c0_i32 = arith.constant 0 : i32
    %c0_i32_0 = arith.constant 0 : i32
    %c0_i32_1 = arith.constant 0 : i32
    return %arg1, %c0_i32, %c0_i32_0 : i32, i32, i32
  }
  func.func @transform_11(%arg0: i32, %arg1: i32) -> (i32, i32, i32) {
    %c0_i32 = arith.constant 0 : i32
    %c0_i32_0 = arith.constant 0 : i32
    %c0_i32_1 = arith.constant 0 : i32
    return %arg1, %c0_i32, %c0_i32_0 : i32, i32, i32
  }
  func.func @transform_12(%arg0: i32, %arg1: i32) -> (i32, i32, i32) {
    %c0_i32 = arith.constant 0 : i32
    %c0_i32_0 = arith.constant 0 : i32
    %c0_i32_1 = arith.constant 0 : i32
    return %arg1, %c0_i32, %c0_i32_0 : i32, i32, i32
  }
  func.func @transform_13(%arg0: i32, %arg1: i32) -> (i32, i32) {
    %c0_i32 = arith.constant 0 : i32
    %c0_i32_0 = arith.constant 0 : i32
    %c0_i32_1 = arith.constant 0 : i32
    return %c0_i32, %c0_i32_0 : i32, i32
  }
  func.func @transform_14(%arg0: i32, %arg1: i32) -> (i32, i32) {
    %c0_i32 = arith.constant 0 : i32
    %c0_i32_0 = arith.constant 0 : i32
    %c0_i32_1 = arith.constant 0 : i32
    return %c0_i32, %c0_i32_0 : i32, i32
  }
  func.func @transform_15(%arg0: i32, %arg1: i32) -> (i32, i32) {
    %c0_i32 = arith.constant 0 : i32
    %c0_i32_0 = arith.constant 0 : i32
    %c0_i32_1 = arith.constant 0 : i32
    return %c0_i32, %c0_i32_0 : i32, i32
  }
  func.func @transform_16(%arg0: i32, %arg1: i32) -> (i32, i32) {
    %c0_i32 = arith.constant 0 : i32
    %c0_i32_0 = arith.constant 0 : i32
    %c0_i32_1 = arith.constant 0 : i32
    return %c0_i32, %c0_i32_0 : i32, i32
  }
  func.func @transform_17(%arg0: i32, %arg1: i32) -> (i32, i32) {
    %c0_i32 = arith.constant 0 : i32
    %c0_i32_0 = arith.constant 0 : i32
    %c0_i32_1 = arith.constant 0 : i32
    return %c0_i32, %c0_i32_0 : i32, i32
  }
  func.func @transform_18(%arg0: i32, %arg1: i32) -> (i32, i32) {
    %c0_i32 = arith.constant 0 : i32
    %c0_i32_0 = arith.constant 0 : i32
    %c0_i32_1 = arith.constant 0 : i32
    return %c0_i32, %c0_i32_0 : i32, i32
  }
  func.func @transform_19(%arg0: i32, %arg1: i32) -> (i32, i32) {
    %c0_i32 = arith.constant 0 : i32
    %c0_i32_0 = arith.constant 0 : i32
    %c0_i32_1 = arith.constant 0 : i32
    return %c0_i32, %c0_i32_0 : i32, i32
  }
  func.func @transform_20(%arg0: i32, %arg1: i32) -> (i32, i32) {
    %c0_i32 = arith.constant 0 : i32
    %c0_i32_0 = arith.constant 0 : i32
    %c0_i32_1 = arith.constant 0 : i32
    return %c0_i32, %c0_i32_0 : i32, i32
  }
  func.func @transform_21(%arg0: i32, %arg1: i32) -> (i32, i32, i32) {
    %c0_i32 = arith.constant 0 : i32
    %c0_i32_0 = arith.constant 0 : i32
    %c0_i32_1 = arith.constant 0 : i32
    return %arg0, %c0_i32, %c0_i32_0 : i32, i32, i32
  }
}

</mosaic_0001>

<llo_original>
// kernel: vanilla_transformer_forward.1
$region0: #{vanilla_transformer_forward.1}
  #allocation0 [shape = 'u32[]', space=smem, size = 0x4, offset = 0x4, fixed_abs, tag = 'smem constant byte address 0x4 - core index']
  #allocation1 [shape = 'u32[72,128]{1,0:T(1,128)}', space=vmem, size = 0x9000, scoped, tag = 'internal scratch']
  #allocation2 [shape = 'f32[16,32]{1,0:T(8,128)}', space=vmem, size = 0x2000, scoped, tag = 'scratch operand']
  %s0 = inlined_call_operand.vmem [shape: f32[2,8,32], index: 0, kind: input, shape index: {}]
  %s1 = inlined_call_operand.vmem [shape: bf16[2,32,96], index: 1, kind: input, shape index: {}]
  %s2 = inlined_call_operand.vmem [shape: f32[2,1,96], index: 2, kind: input, shape index: {}]
  %s3 = inlined_call_operand.vmem [shape: bf16[2,32,32], index: 3, kind: input, shape index: {}]
  %s4 = inlined_call_operand.vmem [shape: f32[2,1,32], index: 4, kind: input, shape index: {}]
  %s5 = inlined_call_operand.vmem [shape: bf16[2,32,64], index: 5, kind: input, shape index: {}]
  %s6 = inlined_call_operand.vmem [shape: f32[2,1,64], index: 6, kind: input, shape index: {}]
  %s7 = inlined_call_operand.vmem [shape: bf16[2,64,32], index: 7, kind: input, shape index: {}]
  %s8 = inlined_call_operand.vmem [shape: f32[2,1,32], index: 8, kind: input, shape index: {}]
  %s9 = inlined_call_operand.vmem [shape: f32[2,1,32], index: 9, kind: input, shape index: {}]
  %s10 = inlined_call_operand.vmem [shape: f32[2,1,32], index: 10, kind: input, shape index: {}]
  %s11 = inlined_call_operand.vmem [shape: f32[2,1,32], index: 11, kind: input, shape index: {}]
  %s12 = inlined_call_operand.vmem [shape: f32[2,1,32], index: 12, kind: input, shape index: {}]
  %s13 = inlined_call_operand.vmem [shape: f32[1,32], index: 13, kind: input, shape index: {}]
  %s14 = inlined_call_operand.vmem [shape: f32[1,32], index: 14, kind: input, shape index: {}]
  %s15 = inlined_call_operand.vmem [shape: bf16[32,16], index: 15, kind: input, shape index: {}]
  %s16 = inlined_call_operand.vmem [shape: f32[1,16], index: 16, kind: input, shape index: {}]
  %s17 = inlined_call_operand.vmem [shape: bf16[16,8], index: 17, kind: input, shape index: {}]
  %s18 = inlined_call_operand.vmem [shape: f32[1,8], index: 18, kind: input, shape index: {}]
  %s19 = inlined_call_operand.vmem [shape: bf16[8,128], index: 19, kind: input, shape index: {}]
  %s20 = inlined_call_operand.vmem [shape: f32[1,128], index: 20, kind: input, shape index: {}]
  %s21 = inlined_call_operand.hbm [shape: f32[2,1,128], index: 21, kind: output, shape index: {}]
  %s22 = sld [smem:[#allocation0]]
  $region125: #{vanilla_transformer_forward.1} parent=0
    _
  %s24 = ssub.s32 1, %s22
  %s25 = scalar_select 0, %s24, %s22
  $region1: #{vanilla_transformer_forward.1} parent=0
    #allocation3 [shape = 'u8[1024]{0}', space=vmem, size = 0x400, scoped, tag = 'output window, operand 0, single buffered']
    #allocation4 [shape = 's32[2]{0}', space=sflag, size = 0x8, scoped, tag = 'scoped memory for vanilla_transformer_forward.1']
    %26 = vsyncpa [#allocation4], 0
    loop: start=0, step=1, limit=4
    $region2: #{vanilla_transformer_forward.1} parent=1 // loop_pre_header
      _
    $region3: #{vanilla_transformer_forward.1} parent=1 // loop_header
      %s28 = sphi 0, %s32
      %p29 = scmp.ge.s32.totalorder %s28, 4
      %s35 = sphi 0, %s47
      %s36 = sphi 0, %s43
      %s37 = sphi 0, %s35
      %s38 = sphi 0, %s36
      %s39 = sphi 0, %s37
      %s40 = sphi 0, %s38
      %s50 = sphi 0, %s52
      %s53 = sphi 0, %s50
      %s54 = sphi 0, %s53
      %s70 = sphi 0, %s54
      %s76 = sphi 0, %s78
      %s79 = sphi 0, %s76
      %s80 = sphi 0, %s79
      %s96 = sphi 0, %s80
      %s102 = sphi 0, %s104
      %s105 = sphi 0, %s102
      %s106 = sphi 0, %s105
      %s122 = sphi 0, %s106
      %s128 = sphi 0, %s130
      %s131 = sphi 0, %s128
      %s132 = sphi 0, %s131
      %s148 = sphi 0, %s132
      %s154 = sphi 0, %s156
      %s157 = sphi 0, %s154
      %s158 = sphi 0, %s157
      %s174 = sphi 0, %s158
      %s180 = sphi 0, %s182
      %s183 = sphi 0, %s180
      %s184 = sphi 0, %s183
      %s200 = sphi 0, %s184
      %s206 = sphi 0, %s208
      %s209 = sphi 0, %s206
      %s210 = sphi 0, %s209
      %s226 = sphi 0, %s210
      %s232 = sphi 0, %s234
      %s235 = sphi 0, %s232
      %s236 = sphi 0, %s235
      %s252 = sphi 0, %s236
      %s258 = sphi 0, %s260
      %s261 = sphi 0, %s258
      %s262 = sphi 0, %s261
      %s278 = sphi 0, %s262
      %s284 = sphi 0, %s286
      %s287 = sphi 0, %s284
      %s288 = sphi 0, %s287
      %s304 = sphi 0, %s288
      %s310 = sphi 0, %s312
      %s313 = sphi 0, %s310
      %s314 = sphi 0, %s313
      %s330 = sphi 0, %s314
      %s336 = sphi 0, %s338
      %s339 = sphi 0, %s336
      %s340 = sphi 0, %s339
      %s356 = sphi 0, %s340
      %s362 = sphi 0, %s364
      %s365 = sphi 0, %s362
      %s366 = sphi 0, %s365
      %s382 = sphi 0, %s366
      %s386 = sphi 0, %s386
      %s388 = sphi 0, %s386
      %s389 = sphi 0, %s388
      %s403 = sphi 0, %s389
      %s407 = sphi 0, %s407
      %s409 = sphi 0, %s407
      %s410 = sphi 0, %s409
      %s424 = sphi 0, %s410
      %s428 = sphi 0, %s428
      %s430 = sphi 0, %s428
      %s431 = sphi 0, %s430
      %s445 = sphi 0, %s431
      %s449 = sphi 0, %s449
      %s451 = sphi 0, %s449
      %s452 = sphi 0, %s451
      %s466 = sphi 0, %s452
      %s470 = sphi 0, %s470
      %s472 = sphi 0, %s470
      %s473 = sphi 0, %s472
      %s487 = sphi 0, %s473
      %s491 = sphi 0, %s491
      %s493 = sphi 0, %s491
      %s494 = sphi 0, %s493
      %s508 = sphi 0, %s494
      %s512 = sphi 0, %s512
      %s514 = sphi 0, %s512
      %s515 = sphi 0, %s514
      %s529 = sphi 0, %s515
      %s533 = sphi 0, %s533
      %s535 = sphi 0, %s533
      %s536 = sphi 0, %s535
      %s550 = sphi 0, %s536
      %s556 = sphi 0, %s558
      %s559 = sphi 0, %s556
      %s560 = sphi 0, %s559
      %s576 = sphi 0, %s560
    $region4: #{vanilla_transformer_forward.1} parent=1 // loop_header_branch
      %31 = sbr.rel (%p29) target = $region8
    $region5: #{vanilla_transformer_forward.1} parent=1 // loop_body
      %s33 = ssub.s32 %s28, 1
      %s34 = ssub.s32 %s28, 2
      %s41 = sadd.s32 1, %s36
      %p42 = scmp.ge.s32.totalorder %s41, 2
      %s43 = scalar_select %p42, 0, %s41
      %s44 = sadd.s32 1, %s35
      %s45 = scalar_select %p42, %s44, %s35
      %p46 = scmp.ge.s32.totalorder %s45, 1
      %s47 = scalar_select %p46, 0, %s45
      %s48 = ssub.s32 %s35, %s47
      %p49 = scmp.eq.s32.totalorder %s48, 0
      %s51 = sadd.s32 %s50, 1
      %s52 = scalar_select %p49, %s50, %s51
      %p55 = pneg %p49
      %p56 = scmp.eq.s32.totalorder %s28, 1
      %p57 = por %p55, %p56
      %p58 = scmp.ne.s32.totalorder %s50, %s53
      %p59 = scmp.eq.s32.totalorder %s28, 0
      %p60 = por %p58, %p59
      %p61 = scmp.ne.s32.totalorder %s50, %s53
      %p62 = scmp.eq.s32.totalorder %s33, 1
      %p63 = por %p61, %p62
      %p64 = scmp.ne.s32.totalorder %s53, %s54
      %p65 = scmp.eq.s32.totalorder %s33, 0
      %p66 = por %p64, %p65
      %p67 = scmp.ne.s32.totalorder %s53, %s54
      %p68 = scmp.eq.s32.totalorder %s34, 1
      %p69 = por %p67, %p68
      %p71 = scmp.ne.s32.totalorder %s54, %s70
      %p72 = scmp.eq.s32.totalorder %s34, 0
      %p73 = por %p71, %p72
      %s74 = ssub.s32 %s36, %s43
      %p75 = scmp.eq.s32.totalorder %s74, 0
      %s77 = sadd.s32 %s76, 1
      %s78 = scalar_select %p75, %s76, %s77
      %p81 = pneg %p75
      %p82 = scmp.eq.s32.totalorder %s28, 1
      %p83 = por %p81, %p82
      %p84 = scmp.ne.s32.totalorder %s76, %s79
      %p85 = scmp.eq.s32.totalorder %s28, 0
      %p86 = por %p84, %p85
      %p87 = scmp.ne.s32.totalorder %s76, %s79
      %p88 = scmp.eq.s32.totalorder %s33, 1
      %p89 = por %p87, %p88
      %p90 = scmp.ne.s32.totalorder %s79, %s80
      %p91 = scmp.eq.s32.totalorder %s33, 0
      %p92 = por %p90, %p91
      %p93 = scmp.ne.s32.totalorder %s79, %s80
      %p94 = scmp.eq.s32.totalorder %s34, 1
      %p95 = por %p93, %p94
      %p97 = scmp.ne.s32.totalorder %s80, %s96
      %p98 = scmp.eq.s32.totalorder %s34, 0
      %p99 = por %p97, %p98
      %s100 = ssub.s32 %s36, %s43
      %p101 = scmp.eq.s32.totalorder %s100, 0
      %s103 = sadd.s32 %s102, 1
      %s104 = scalar_select %p101, %s102, %s103
      %p107 = pneg %p101
      %p108 = scmp.eq.s32.totalorder %s28, 1
      %p109 = por %p107, %p108
      %p110 = scmp.ne.s32.totalorder %s102, %s105
      %p111 = scmp.eq.s32.totalorder %s28, 0
      %p112 = por %p110, %p111
      %p113 = scmp.ne.s32.totalorder %s102, %s105
      %p114 = scmp.eq.s32.totalorder %s33, 1
      %p115 = por %p113, %p114
      %p116 = scmp.ne.s32.totalorder %s105, %s106
      %p117 = scmp.eq.s32.totalorder %s33, 0
      %p118 = por %p116, %p117
      %p119 = scmp.ne.s32.totalorder %s105, %s106
      %p120 = scmp.eq.s32.totalorder %s34, 1
      %p121 = por %p119, %p120
      %p123 = scmp.ne.s32.totalorder %s106, %s122
      %p124 = scmp.eq.s32.totalorder %s34, 0
      %p125 = por %p123, %p124
      %s126 = ssub.s32 %s36, %s43
      %p127 = scmp.eq.s32.totalorder %s126, 0
      %s129 = sadd.s32 %s128, 1
      %s130 = scalar_select %p127, %s128, %s129
      %p133 = pneg %p127
      %p134 = scmp.eq.s32.totalorder %s28, 1
      %p135 = por %p133, %p134
      %p136 = scmp.ne.s32.totalorder %s128, %s131
      %p137 = scmp.eq.s32.totalorder %s28, 0
      %p138 = por %p136, %p137
      %p139 = scmp.ne.s32.totalorder %s128, %s131
      %p140 = scmp.eq.s32.totalorder %s33, 1
      %p141 = por %p139, %p140
      %p142 = scmp.ne.s32.totalorder %s131, %s132
      %p143 = scmp.eq.s32.totalorder %s33, 0
      %p144 = por %p142, %p143
      %p145 = scmp.ne.s32.totalorder %s131, %s132
      %p146 = scmp.eq.s32.totalorder %s34, 1
      %p147 = por %p145, %p146
      %p149 = scmp.ne.s32.totalorder %s132, %s148
      %p150 = scmp.eq.s32.totalorder %s34, 0
      %p151 = por %p149, %p150
      %s152 = ssub.s32 %s36, %s43
      %p153 = scmp.eq.s32.totalorder %s152, 0
      %s155 = sadd.s32 %s154, 1
      %s156 = scalar_select %p153, %s154, %s155
      %p159 = pneg %p153
      %p160 = scmp.eq.s32.totalorder %s28, 1
      %p161 = por %p159, %p160
      %p162 = scmp.ne.s32.totalorder %s154, %s157
      %p163 = scmp.eq.s32.totalorder %s28, 0
      %p164 = por %p162, %p163
      %p165 = scmp.ne.s32.totalorder %s154, %s157
      %p166 = scmp.eq.s32.totalorder %s33, 1
      %p167 = por %p165, %p166
      %p168 = scmp.ne.s32.totalorder %s157, %s158
      %p169 = scmp.eq.s32.totalorder %s33, 0
      %p170 = por %p168, %p169
      %p171 = scmp.ne.s32.totalorder %s157, %s158
      %p172 = scmp.eq.s32.totalorder %s34, 1
      %p173 = por %p171, %p172
      %p175 = scmp.ne.s32.totalorder %s158, %s174
      %p176 = scmp.eq.s32.totalorder %s34, 0
      %p177 = por %p175, %p176
      %s178 = ssub.s32 %s36, %s43
      %p179 = scmp.eq.s32.totalorder %s178, 0
      %s181 = sadd.s32 %s180, 1
      %s182 = scalar_select %p179, %s180, %s181
      %p185 = pneg %p179
      %p186 = scmp.eq.s32.totalorder %s28, 1
      %p187 = por %p185, %p186
      %p188 = scmp.ne.s32.totalorder %s180, %s183
      %p189 = scmp.eq.s32.totalorder %s28, 0
      %p190 = por %p188, %p189
      %p191 = scmp.ne.s32.totalorder %s180, %s183
      %p192 = scmp.eq.s32.totalorder %s33, 1
      %p193 = por %p191, %p192
      %p194 = scmp.ne.s32.totalorder %s183, %s184
      %p195 = scmp.eq.s32.totalorder %s33, 0
      %p196 = por %p194, %p195
      %p197 = scmp.ne.s32.totalorder %s183, %s184
      %p198 = scmp.eq.s32.totalorder %s34, 1
      %p199 = por %p197, %p198
      %p201 = scmp.ne.s32.totalorder %s184, %s200
      %p202 = scmp.eq.s32.totalorder %s34, 0
      %p203 = por %p201, %p202
      %s204 = ssub.s32 %s36, %s43
      %p205 = scmp.eq.s32.totalorder %s204, 0
      %s207 = sadd.s32 %s206, 1
      %s208 = scalar_select %p205, %s206, %s207
      %p211 = pneg %p205
      %p212 = scmp.eq.s32.totalorder %s28, 1
      %p213 = por %p211, %p212
      %p214 = scmp.ne.s32.totalorder %s206, %s209
      %p215 = scmp.eq.s32.totalorder %s28, 0
      %p216 = por %p214, %p215
      %p217 = scmp.ne.s32.totalorder %s206, %s209
      %p218 = scmp.eq.s32.totalorder %s33, 1
      %p219 = por %p217, %p218
      %p220 = scmp.ne.s32.totalorder %s209, %s210
      %p221 = scmp.eq.s32.totalorder %s33, 0
      %p222 = por %p220, %p221
      %p223 = scmp.ne.s32.totalorder %s209, %s210
      %p224 = scmp.eq.s32.totalorder %s34, 1
      %p225 = por %p223, %p224
      %p227 = scmp.ne.s32.totalorder %s210, %s226
      %p228 = scmp.eq.s32.totalorder %s34, 0
      %p229 = por %p227, %p228
      %s230 = ssub.s32 %s36, %s43
      %p231 = scmp.eq.s32.totalorder %s230, 0
      %s233 = sadd.s32 %s232, 1
      %s234 = scalar_select %p231, %s232, %s233
      %p237 = pneg %p231
      %p238 = scmp.eq.s32.totalorder %s28, 1
      %p239 = por %p237, %p238
      %p240 = scmp.ne.s32.totalorder %s232, %s235
      %p241 = scmp.eq.s32.totalorder %s28, 0
      %p242 = por %p240, %p241
      %p243 = scmp.ne.s32.totalorder %s232, %s235
      %p244 = scmp.eq.s32.totalorder %s33, 1
      %p245 = por %p243, %p244
      %p246 = scmp.ne.s32.totalorder %s235, %s236
      %p247 = scmp.eq.s32.totalorder %s33, 0
      %p248 = por %p246, %p247
      %p249 = scmp.ne.s32.totalorder %s235, %s236
      %p250 = scmp.eq.s32.totalorder %s34, 1
      %p251 = por %p249, %p250
      %p253 = scmp.ne.s32.totalorder %s236, %s252
      %p254 = scmp.eq.s32.totalorder %s34, 0
      %p255 = por %p253, %p254
      %s256 = ssub.s32 %s36, %s43
      %p257 = scmp.eq.s32.totalorder %s256, 0
      %s259 = sadd.s32 %s258, 1
      %s260 = scalar_select %p257, %s258, %s259
      %p263 = pneg %p257
      %p264 = scmp.eq.s32.totalorder %s28, 1
      %p265 = por %p263, %p264
      %p266 = scmp.ne.s32.totalorder %s258, %s261
      %p267 = scmp.eq.s32.totalorder %s28, 0
      %p268 = por %p266, %p267
      %p269 = scmp.ne.s32.totalorder %s258, %s261
      %p270 = scmp.eq.s32.totalorder %s33, 1
      %p271 = por %p269, %p270
      %p272 = scmp.ne.s32.totalorder %s261, %s262
      %p273 = scmp.eq.s32.totalorder %s33, 0
      %p274 = por %p272, %p273
      %p275 = scmp.ne.s32.totalorder %s261, %s262
      %p276 = scmp.eq.s32.totalorder %s34, 1
      %p277 = por %p275, %p276
      %p279 = scmp.ne.s32.totalorder %s262, %s278
      %p280 = scmp.eq.s32.totalorder %s34, 0
      %p281 = por %p279, %p280
      %s282 = ssub.s32 %s36, %s43
      %p283 = scmp.eq.s32.totalorder %s282, 0
      %s285 = sadd.s32 %s284, 1
      %s286 = scalar_select %p283, %s284, %s285
      %p289 = pneg %p283
      %p290 = scmp.eq.s32.totalorder %s28, 1
      %p291 = por %p289, %p290
      %p292 = scmp.ne.s32.totalorder %s284, %s287
      %p293 = scmp.eq.s32.totalorder %s28, 0
      %p294 = por %p292, %p293
      %p295 = scmp.ne.s32.totalorder %s284, %s287
      %p296 = scmp.eq.s32.totalorder %s33, 1
      %p297 = por %p295, %p296
      %p298 = scmp.ne.s32.totalorder %s287, %s288
      %p299 = scmp.eq.s32.totalorder %s33, 0
      %p300 = por %p298, %p299
      %p301 = scmp.ne.s32.totalorder %s287, %s288
      %p302 = scmp.eq.s32.totalorder %s34, 1
      %p303 = por %p301, %p302
      %p305 = scmp.ne.s32.totalorder %s288, %s304
      %p306 = scmp.eq.s32.totalorder %s34, 0
      %p307 = por %p305, %p306
      %s308 = ssub.s32 %s36, %s43
      %p309 = scmp.eq.s32.totalorder %s308, 0
      %s311 = sadd.s32 %s310, 1
      %s312 = scalar_select %p309, %s310, %s311
      %p315 = pneg %p309
      %p316 = scmp.eq.s32.totalorder %s28, 1
      %p317 = por %p315, %p316
      %p318 = scmp.ne.s32.totalorder %s310, %s313
      %p319 = scmp.eq.s32.totalorder %s28, 0
      %p320 = por %p318, %p319
      %p321 = scmp.ne.s32.totalorder %s310, %s313
      %p322 = scmp.eq.s32.totalorder %s33, 1
      %p323 = por %p321, %p322
      %p324 = scmp.ne.s32.totalorder %s313, %s314
      %p325 = scmp.eq.s32.totalorder %s33, 0
      %p326 = por %p324, %p325
      %p327 = scmp.ne.s32.totalorder %s313, %s314
      %p328 = scmp.eq.s32.totalorder %s34, 1
      %p329 = por %p327, %p328
      %p331 = scmp.ne.s32.totalorder %s314, %s330
      %p332 = scmp.eq.s32.totalorder %s34, 0
      %p333 = por %p331, %p332
      %s334 = ssub.s32 %s36, %s43
      %p335 = scmp.eq.s32.totalorder %s334, 0
      %s337 = sadd.s32 %s336, 1
      %s338 = scalar_select %p335, %s336, %s337
      %p341 = pneg %p335
      %p342 = scmp.eq.s32.totalorder %s28, 1
      %p343 = por %p341, %p342
      %p344 = scmp.ne.s32.totalorder %s336, %s339
      %p345 = scmp.eq.s32.totalorder %s28, 0
      %p346 = por %p344, %p345
      %p347 = scmp.ne.s32.totalorder %s336, %s339
      %p348 = scmp.eq.s32.totalorder %s33, 1
      %p349 = por %p347, %p348
      %p350 = scmp.ne.s32.totalorder %s339, %s340
      %p351 = scmp.eq.s32.totalorder %s33, 0
      %p352 = por %p350, %p351
      %p353 = scmp.ne.s32.totalorder %s339, %s340
      %p354 = scmp.eq.s32.totalorder %s34, 1
      %p355 = por %p353, %p354
      %p357 = scmp.ne.s32.totalorder %s340, %s356
      %p358 = scmp.eq.s32.totalorder %s34, 0
      %p359 = por %p357, %p358
      %s360 = ssub.s32 %s36, %s43
      %p361 = scmp.eq.s32.totalorder %s360, 0
      %s363 = sadd.s32 %s362, 1
      %s364 = scalar_select %p361, %s362, %s363
      %p367 = pneg %p361
      %p368 = scmp.eq.s32.totalorder %s28, 1
      %p369 = por %p367, %p368
      %p370 = scmp.ne.s32.totalorder %s362, %s365
      %p371 = scmp.eq.s32.totalorder %s28, 0
      %p372 = por %p370, %p371
      %p373 = scmp.ne.s32.totalorder %s362, %s365
      %p374 = scmp.eq.s32.totalorder %s33, 1
      %p375 = por %p373, %p374
      %p376 = scmp.ne.s32.totalorder %s365, %s366
      %p377 = scmp.eq.s32.totalorder %s33, 0
      %p378 = por %p376, %p377
      %p379 = scmp.ne.s32.totalorder %s365, %s366
      %p380 = scmp.eq.s32.totalorder %s34, 1
      %p381 = por %p379, %p380
      %p383 = scmp.ne.s32.totalorder %s366, %s382
      %p384 = scmp.eq.s32.totalorder %s34, 0
      %p385 = por %p383, %p384
      %s387 = sadd.s32 %s386, 1
      %p390 = scmp.eq.s32.totalorder %s28, 1
      %p391 = scmp.ne.s32.totalorder %s386, %s388
      %p392 = scmp.eq.s32.totalorder %s28, 0
      %p393 = por %p391, %p392
      %p394 = scmp.ne.s32.totalorder %s386, %s388
      %p395 = scmp.eq.s32.totalorder %s33, 1
      %p396 = por %p394, %p395
      %p397 = scmp.ne.s32.totalorder %s388, %s389
      %p398 = scmp.eq.s32.totalorder %s33, 0
      %p399 = por %p397, %p398
      %p400 = scmp.ne.s32.totalorder %s388, %s389
      %p401 = scmp.eq.s32.totalorder %s34, 1
      %p402 = por %p400, %p401
      %p404 = scmp.ne.s32.totalorder %s389, %s403
      %p405 = scmp.eq.s32.totalorder %s34, 0
      %p406 = por %p404, %p405
      %s408 = sadd.s32 %s407, 1
      %p411 = scmp.eq.s32.totalorder %s28, 1
      %p412 = scmp.ne.s32.totalorder %s407, %s409
      %p413 = scmp.eq.s32.totalorder %s28, 0
      %p414 = por %p412, %p413
      %p415 = scmp.ne.s32.totalorder %s407, %s409
      %p416 = scmp.eq.s32.totalorder %s33, 1
      %p417 = por %p415, %p416
      %p418 = scmp.ne.s32.totalorder %s409, %s410
      %p419 = scmp.eq.s32.totalorder %s33, 0
      %p420 = por %p418, %p419
      %p421 = scmp.ne.s32.totalorder %s409, %s410
      %p422 = scmp.eq.s32.totalorder %s34, 1
      %p423 = por %p421, %p422
      %p425 = scmp.ne.s32.totalorder %s410, %s424
      %p426 = scmp.eq.s32.totalorder %s34, 0
      %p427 = por %p425, %p426
      %s429 = sadd.s32 %s428, 1
      %p432 = scmp.eq.s32.totalorder %s28, 1
      %p433 = scmp.ne.s32.totalorder %s428, %s430
      %p434 = scmp.eq.s32.totalorder %s28, 0
      %p435 = por %p433, %p434
      %p436 = scmp.ne.s32.totalorder %s428, %s430
      %p437 = scmp.eq.s32.totalorder %s33, 1
      %p438 = por %p436, %p437
      %p439 = scmp.ne.s32.totalorder %s430, %s431
      %p440 = scmp.eq.s32.totalorder %s33, 0
      %p441 = por %p439, %p440
      %p442 = scmp.ne.s32.totalorder %s430, %s431
      %p443 = scmp.eq.s32.totalorder %s34, 1
      %p444 = por %p442, %p443
      %p446 = scmp.ne.s32.totalorder %s431, %s445
      %p447 = scmp.eq.s32.totalorder %s34, 0
      %p448 = por %p446, %p447
      %s450 = sadd.s32 %s449, 1
      %p453 = scmp.eq.s32.totalorder %s28, 1
      %p454 = scmp.ne.s32.totalorder %s449, %s451
      %p455 = scmp.eq.s32.totalorder %s28, 0
      %p456 = por %p454, %p455
      %p457 = scmp.ne.s32.totalorder %s449, %s451
      %p458 = scmp.eq.s32.totalorder %s33, 1
      %p459 = por %p457, %p458
      %p460 = scmp.ne.s32.totalorder %s451, %s452
      %p461 = scmp.eq.s32.totalorder %s33, 0
      %p462 = por %p460, %p461
      %p463 = scmp.ne.s32.totalorder %s451, %s452
      %p464 = scmp.eq.s32.totalorder %s34, 1
      %p465 = por %p463, %p464
      %p467 = scmp.ne.s32.totalorder %s452, %s466
      %p468 = scmp.eq.s32.totalorder %s34, 0
      %p469 = por %p467, %p468
      %s471 = sadd.s32 %s470, 1
      %p474 = scmp.eq.s32.totalorder %s28, 1
      %p475 = scmp.ne.s32.totalorder %s470, %s472
      %p476 = scmp.eq.s32.totalorder %s28, 0
      %p477 = por %p475, %p476
      %p478 = scmp.ne.s32.totalorder %s470, %s472
      %p479 = scmp.eq.s32.totalorder %s33, 1
      %p480 = por %p478, %p479
      %p481 = scmp.ne.s32.totalorder %s472, %s473
      %p482 = scmp.eq.s32.totalorder %s33, 0
      %p483 = por %p481, %p482
      %p484 = scmp.ne.s32.totalorder %s472, %s473
      %p485 = scmp.eq.s32.totalorder %s34, 1
      %p486 = por %p484, %p485
      %p488 = scmp.ne.s32.totalorder %s473, %s487
      %p489 = scmp.eq.s32.totalorder %s34, 0
      %p490 = por %p488, %p489
      %s492 = sadd.s32 %s491, 1
      %p495 = scmp.eq.s32.totalorder %s28, 1
      %p496 = scmp.ne.s32.totalorder %s491, %s493
      %p497 = scmp.eq.s32.totalorder %s28, 0
      %p498 = por %p496, %p497
      %p499 = scmp.ne.s32.totalorder %s491, %s493
      %p500 = scmp.eq.s32.totalorder %s33, 1
      %p501 = por %p499, %p500
      %p502 = scmp.ne.s32.totalorder %s493, %s494
      %p503 = scmp.eq.s32.totalorder %s33, 0
      %p504 = por %p502, %p503
      %p505 = scmp.ne.s32.totalorder %s493, %s494
      %p506 = scmp.eq.s32.totalorder %s34, 1
      %p507 = por %p505, %p506
      %p509 = scmp.ne.s32.totalorder %s494, %s508
      %p510 = scmp.eq.s32.totalorder %s34, 0
      %p511 = por %p509, %p510
      %s513 = sadd.s32 %s512, 1
      %p516 = scmp.eq.s32.totalorder %s28, 1
      %p517 = scmp.ne.s32.totalorder %s512, %s514
      %p518 = scmp.eq.s32.totalorder %s28, 0
      %p519 = por %p517, %p518
      %p520 = scmp.ne.s32.totalorder %s512, %s514
      %p521 = scmp.eq.s32.totalorder %s33, 1
      %p522 = por %p520, %p521
      %p523 = scmp.ne.s32.totalorder %s514, %s515
      %p524 = scmp.eq.s32.totalorder %s33, 0
      %p525 = por %p523, %p524
      %p526 = scmp.ne.s32.totalorder %s514, %s515
      %p527 = scmp.eq.s32.totalorder %s34, 1
      %p528 = por %p526, %p527
      %p530 = scmp.ne.s32.totalorder %s515, %s529
      %p531 = scmp.eq.s32.totalorder %s34, 0
      %p532 = por %p530, %p531
      %s534 = sadd.s32 %s533, 1
      %p537 = scmp.eq.s32.totalorder %s28, 1
      %p538 = scmp.ne.s32.totalorder %s533, %s535
      %p539 = scmp.eq.s32.totalorder %s28, 0
      %p540 = por %p538, %p539
      %p541 = scmp.ne.s32.totalorder %s533, %s535
      %p542 = scmp.eq.s32.totalorder %s33, 1
      %p543 = por %p541, %p542
      %p544 = scmp.ne.s32.totalorder %s535, %s536
      %p545 = scmp.eq.s32.totalorder %s33, 0
      %p546 = por %p544, %p545
      %p547 = scmp.ne.s32.totalorder %s535, %s536
      %p548 = scmp.eq.s32.totalorder %s34, 1
      %p549 = por %p547, %p548
      %p551 = scmp.ne.s32.totalorder %s536, %s550
      %p552 = scmp.eq.s32.totalorder %s34, 0
      %p553 = por %p551, %p552
      %s554 = ssub.s32 %s35, %s47
      %p555 = scmp.eq.s32.totalorder %s554, 0
      %s557 = sadd.s32 %s556, 1
      %s558 = scalar_select %p555, %s556, %s557
      %p561 = pneg %p555
      %p562 = scmp.eq.s32.totalorder %s28, 1
      %p563 = por %p561, %p562
      %p564 = scmp.ne.s32.totalorder %s556, %s559
      %p565 = scmp.eq.s32.totalorder %s28, 0
      %p566 = por %p564, %p565
      %p567 = scmp.ne.s32.totalorder %s556, %s559
      %p568 = scmp.eq.s32.totalorder %s33, 1
      %p569 = por %p567, %p568
      %p570 = scmp.ne.s32.totalorder %s559, %s560
      %p571 = scmp.eq.s32.totalorder %s33, 0
      %p572 = por %p570, %p571
      %p573 = scmp.ne.s32.totalorder %s559, %s560
      %p574 = scmp.eq.s32.totalorder %s34, 1
      %p575 = por %p573, %p574
      %p577 = scmp.ne.s32.totalorder %s560, %s576
      %p578 = scmp.eq.s32.totalorder %s34, 0
      %p579 = por %p577, %p578
      %p580 = scmp.le.s32.totalorder 1, %s28
      %p581 = scmp.lt.s32.totalorder %s28, 3
      %p582 = pnand %p580, %p581
      %p583 = pneg %p582
      // Predicated region
      $region9: #{vanilla_transformer_forward.1} parent=5 // pred_check
        _
      $region10: #{vanilla_transformer_forward.1} parent=5 // pred_check_branch
        %585 = sbr.rel (%p582) target = $region12
      $region11: #{vanilla_transformer_forward.1} parent=5 // pred_region
        %s586 = ssub.s32 %s28, 1
        // Predicated region
        $region13: #{vanilla_transformer_forward.1} parent=11 // pred_check
          %p587 = pneg %p66
        $region14: #{vanilla_transformer_forward.1} parent=11 // pred_check_branch
          %589 = sbr.rel (%p587) target = $region16
        $region15: #{vanilla_transformer_forward.1} parent=11 // pred_region
          %s590 = smul.u32 2, %s37
          %p591 = scmp.lt.s32.totalorder %s590, 1
          %s592 = scalar_select %p591, %s590, 1
          %s593 = smul.addr %s592, 8
          %s594 = scalar_lea.vmem %s0, %s593
          %s595 = smul.u32 2, %s37
        $region16: #{vanilla_transformer_forward.1} parent=11 // pred_fallthru
          _
        // Predicated region
        $region17: #{vanilla_transformer_forward.1} parent=11 // pred_check
          %p596 = pneg %p399
        $region18: #{vanilla_transformer_forward.1} parent=11 // pred_check_branch
          %598 = sbr.rel (%p596) target = $region20
        $region19: #{vanilla_transformer_forward.1} parent=11 // pred_region
          _
        $region20: #{vanilla_transformer_forward.1} parent=11 // pred_fallthru
          _
        // Predicated region
        $region21: #{vanilla_transformer_forward.1} parent=11 // pred_check
          %p599 = pneg %p420
        $region22: #{vanilla_transformer_forward.1} parent=11 // pred_check_branch
          %601 = sbr.rel (%p599) target = $region24
        $region23: #{vanilla_transformer_forward.1} parent=11 // pred_region
          _
        $region24: #{vanilla_transformer_forward.1} parent=11 // pred_fallthru
          _
        // Predicated region
        $region25: #{vanilla_transformer_forward.1} parent=11 // pred_check
          %p602 = pneg %p441
        $region26: #{vanilla_transformer_forward.1} parent=11 // pred_check_branch
          %604 = sbr.rel (%p602) target = $region28
        $region27: #{vanilla_transformer_forward.1} parent=11 // pred_region
          _
        $region28: #{vanilla_transformer_forward.1} parent=11 // pred_fallthru
          _
        // Predicated region
        $region29: #{vanilla_transformer_forward.1} parent=11 // pred_check
          %p605 = pneg %p462
        $region30: #{vanilla_transformer_forward.1} parent=11 // pred_check_branch
          %607 = sbr.rel (%p605) target = $region32
        $region31: #{vanilla_transformer_forward.1} parent=11 // pred_region
          _
        $region32: #{vanilla_transformer_forward.1} parent=11 // pred_fallthru
          _
        // Predicated region
        $region33: #{vanilla_transformer_forward.1} parent=11 // pred_check
          %p608 = pneg %p483
        $region34: #{vanilla_transformer_forward.1} parent=11 // pred_check_branch
          %610 = sbr.rel (%p608) target = $region36
        $region35: #{vanilla_transformer_forward.1} parent=11 // pred_region
          _
        $region36: #{vanilla_transformer_forward.1} parent=11 // pred_fallthru
          _
        // Predicated region
        $region37: #{vanilla_transformer_forward.1} parent=11 // pred_check
          %p611 = pneg %p504
        $region38: #{vanilla_transformer_forward.1} parent=11 // pred_check_branch
          %613 = sbr.rel (%p611) target = $region40
        $region39: #{vanilla_transformer_forward.1} parent=11 // pred_region
          _
        $region40: #{vanilla_transformer_forward.1} parent=11 // pred_fallthru
          _
        // Predicated region
        $region41: #{vanilla_transformer_forward.1} parent=11 // pred_check
          %p614 = pneg %p525
        $region42: #{vanilla_transformer_forward.1} parent=11 // pred_check_branch
          %616 = sbr.rel (%p614) target = $region44
        $region43: #{vanilla_transformer_forward.1} parent=11 // pred_region
          _
        $region44: #{vanilla_transformer_forward.1} parent=11 // pred_fallthru
          _
        // Predicated region
        $region45: #{vanilla_transformer_forward.1} parent=11 // pred_check
          %p617 = pneg %p546
        $region46: #{vanilla_transformer_forward.1} parent=11 // pred_check_branch
          %619 = sbr.rel (%p617) target = $region48
        $region47: #{vanilla_transformer_forward.1} parent=11 // pred_region
          _
        $region48: #{vanilla_transformer_forward.1} parent=11 // pred_fallthru
          _
      $region12: #{vanilla_transformer_forward.1} parent=5 // pred_fallthru
        _
      %p620 = scmp.lt.s32.totalorder %s28, 2
      // Predicated region
      $region49: #{vanilla_transformer_forward.1} parent=5 // pred_check
        %p621 = pneg %p620
      $region50: #{vanilla_transformer_forward.1} parent=5 // pred_check_branch
        %623 = sbr.rel (%p621) target = $region52
      $region51: #{vanilla_transformer_forward.1} parent=5 // pred_region
        // Predicated region
        $region53: #{vanilla_transformer_forward.1} parent=51 // pred_check
          %p624 = pneg %p86
        $region54: #{vanilla_transformer_forward.1} parent=51 // pred_check_branch
          %626 = sbr.rel (%p624) target = $region56
        $region55: #{vanilla_transformer_forward.1} parent=51 // pred_region
          %p627 = scmp.lt.s32.totalorder %s36, 1
          %s628 = scalar_select %p627, %s36, 1
          %s629 = smul.addr %s628, 4
          %s630 = smul.addr %s629, 4
          %s631 = scalar_lea.vmem %s1, %s630
        $region56: #{vanilla_transformer_forward.1} parent=51 // pred_fallthru
          _
        // Predicated region
        $region57: #{vanilla_transformer_forward.1} parent=51 // pred_check
          %p632 = pneg %p112
        $region58: #{vanilla_transformer_forward.1} parent=51 // pred_check_branch
          %634 = sbr.rel (%p632) target = $region60
        $region59: #{vanilla_transformer_forward.1} parent=51 // pred_region
          %p635 = scmp.lt.s32.totalorder %s36, 1
          %s636 = scalar_select %p635, %s36, 1
          %s637 = scalar_lea.vmem %s2, %s636
        $region60: #{vanilla_transformer_forward.1} parent=51 // pred_fallthru
          _
        // Predicated region
        $region61: #{vanilla_transformer_forward.1} parent=51 // pred_check
          %p638 = pneg %p138
        $region62: #{vanilla_transformer_forward.1} parent=51 // pred_check_branch
          %640 = sbr.rel (%p638) target = $region64
        $region63: #{vanilla_transformer_forward.1} parent=51 // pred_region
          %p641 = scmp.lt.s32.totalorder %s36, 1
          %s642 = scalar_select %p641, %s36, 1
          %s643 = smul.addr %s642, 4
          %s644 = smul.addr %s643, 4
          %s645 = scalar_lea.vmem %s3, %s644
        $region64: #{vanilla_transformer_forward.1} parent=51 // pred_fallthru
          _
        // Predicated region
        $region65: #{vanilla_transformer_forward.1} parent=51 // pred_check
          %p646 = pneg %p164
        $region66: #{vanilla_transformer_forward.1} parent=51 // pred_check_branch
          %648 = sbr.rel (%p646) target = $region68
        $region67: #{vanilla_transformer_forward.1} parent=51 // pred_region
          %p649 = scmp.lt.s32.totalorder %s36, 1
          %s650 = scalar_select %p649, %s36, 1
          %s651 = scalar_lea.vmem %s4, %s650
        $region68: #{vanilla_transformer_forward.1} parent=51 // pred_fallthru
          _
        // Predicated region
        $region69: #{vanilla_transformer_forward.1} parent=51 // pred_check
          %p652 = pneg %p190
        $region70: #{vanilla_transformer_forward.1} parent=51 // pred_check_branch
          %654 = sbr.rel (%p652) target = $region72
        $region71: #{vanilla_transformer_forward.1} parent=51 // pred_region
          %p655 = scmp.lt.s32.totalorder %s36, 1
          %s656 = scalar_select %p655, %s36, 1
          %s657 = smul.addr %s656, 4
          %s658 = smul.addr %s657, 4
          %s659 = scalar_lea.vmem %s5, %s658
        $region72: #{vanilla_transformer_forward.1} parent=51 // pred_fallthru
          _
        // Predicated region
        $region73: #{vanilla_transformer_forward.1} parent=51 // pred_check
          %p660 = pneg %p216
        $region74: #{vanilla_transformer_forward.1} parent=51 // pred_check_branch
          %662 = sbr.rel (%p660) target = $region76
        $region75: #{vanilla_transformer_forward.1} parent=51 // pred_region
          %p663 = scmp.lt.s32.totalorder %s36, 1
          %s664 = scalar_select %p663, %s36, 1
          %s665 = scalar_lea.vmem %s6, %s664
        $region76: #{vanilla_transformer_forward.1} parent=51 // pred_fallthru
          _
        // Predicated region
        $region77: #{vanilla_transformer_forward.1} parent=51 // pred_check
          %p666 = pneg %p242
        $region78: #{vanilla_transformer_forward.1} parent=51 // pred_check_branch
          %668 = sbr.rel (%p666) target = $region80
        $region79: #{vanilla_transformer_forward.1} parent=51 // pred_region
          %p669 = scmp.lt.s32.totalorder %s36, 1
          %s670 = scalar_select %p669, %s36, 1
          %s671 = smul.addr %s670, 8
          %s672 = smul.addr %s671, 4
          %s673 = scalar_lea.vmem %s7, %s672
        $region80: #{vanilla_transformer_forward.1} parent=51 // pred_fallthru
          _
        // Predicated region
        $region81: #{vanilla_transformer_forward.1} parent=51 // pred_check
          %p674 = pneg %p268
        $region82: #{vanilla_transformer_forward.1} parent=51 // pred_check_branch
          %676 = sbr.rel (%p674) target = $region84
        $region83: #{vanilla_transformer_forward.1} parent=51 // pred_region
          %p677 = scmp.lt.s32.totalorder %s36, 1
          %s678 = scalar_select %p677, %s36, 1
          %s679 = scalar_lea.vmem %s8, %s678
        $region84: #{vanilla_transformer_forward.1} parent=51 // pred_fallthru
          _
        // Predicated region
        $region85: #{vanilla_transformer_forward.1} parent=51 // pred_check
          %p680 = pneg %p294
        $region86: #{vanilla_transformer_forward.1} parent=51 // pred_check_branch
          %682 = sbr.rel (%p680) target = $region88
        $region87: #{vanilla_transformer_forward.1} parent=51 // pred_region
          %p683 = scmp.lt.s32.totalorder %s36, 1
          %s684 = scalar_select %p683, %s36, 1
          %s685 = scalar_lea.vmem %s9, %s684
        $region88: #{vanilla_transformer_forward.1} parent=51 // pred_fallthru
          _
        // Predicated region
        $region89: #{vanilla_transformer_forward.1} parent=51 // pred_check
          %p686 = pneg %p320
        $region90: #{vanilla_transformer_forward.1} parent=51 // pred_check_branch
          %688 = sbr.rel (%p686) target = $region92
        $region91: #{vanilla_transformer_forward.1} parent=51 // pred_region
          %p689 = scmp.lt.s32.totalorder %s36, 1
          %s690 = scalar_select %p689, %s36, 1
          %s691 = scalar_lea.vmem %s10, %s690
        $region92: #{vanilla_transformer_forward.1} parent=51 // pred_fallthru
          _
        // Predicated region
        $region93: #{vanilla_transformer_forward.1} parent=51 // pred_check
          %p692 = pneg %p346
        $region94: #{vanilla_transformer_forward.1} parent=51 // pred_check_branch
          %694 = sbr.rel (%p692) target = $region96
        $region95: #{vanilla_transformer_forward.1} parent=51 // pred_region
          %p695 = scmp.lt.s32.totalorder %s36, 1
          %s696 = scalar_select %p695, %s36, 1
          %s697 = scalar_lea.vmem %s11, %s696
        $region96: #{vanilla_transformer_forward.1} parent=51 // pred_fallthru
          _
        // Predicated region
        $region97: #{vanilla_transformer_forward.1} parent=51 // pred_check
          %p698 = pneg %p372
        $region98: #{vanilla_transformer_forward.1} parent=51 // pred_check_branch
          %700 = sbr.rel (%p698) target = $region100
        $region99: #{vanilla_transformer_forward.1} parent=51 // pred_region
          %p701 = scmp.lt.s32.totalorder %s36, 1
          %s702 = scalar_select %p701, %s36, 1
          %s703 = scalar_lea.vmem %s12, %s702
        $region100: #{vanilla_transformer_forward.1} parent=51 // pred_fallthru
          _
      $region52: #{vanilla_transformer_forward.1} parent=5 // pred_fallthru
        _
      %p704 = scmp.le.s32.totalorder 1, %s28
      %p705 = scmp.lt.s32.totalorder %s28, 3
      %p706 = pnand %p704, %p705
      %p707 = pneg %p706
      // Predicated region
      $region101: #{vanilla_transformer_forward.1} parent=5 // pred_check
        _
      $region102: #{vanilla_transformer_forward.1} parent=5 // pred_check_branch
        %709 = sbr.rel (%p706) target = $region104
      $region103: #{vanilla_transformer_forward.1} parent=5 // pred_region
        %s710 = ssub.s32 %s28, 1
        %s711 = smul.u32 2, %s37
        %p712 = scmp.lt.s32.totalorder %s711, 1
        %s713 = scalar_select %p712, %s711, 1
        %s714 = smul.addr %s713, 8
        %s715 = scalar_lea.vmem %s0, %s714
        %p716 = pneg %p66
        %p717 = pneg %p63
        %p718 = scmp.lt.s32.totalorder %s38, 1
        %s719 = scalar_select %p718, %s38, 1
        %s720 = smul.addr %s719, 4
        %s721 = smul.addr %s720, 4
        %s722 = scalar_lea.vmem %s1, %s721
        %p723 = pneg %p92
        %p724 = pneg %p89
        %p725 = scmp.lt.s32.totalorder %s38, 1
        %s726 = scalar_select %p725, %s38, 1
        %s727 = scalar_lea.vmem %s2, %s726
        %p728 = pneg %p118
        %p729 = pneg %p115
        %p730 = scmp.lt.s32.totalorder %s38, 1
        %s731 = scalar_select %p730, %s38, 1
        %s732 = smul.addr %s731, 4
        %s733 = smul.addr %s732, 4
        %s734 = scalar_lea.vmem %s3, %s733
        %p735 = pneg %p144
        %p736 = pneg %p141
        %p737 = scmp.lt.s32.totalorder %s38, 1
        %s738 = scalar_select %p737, %s38, 1
        %s739 = scalar_lea.vmem %s4, %s738
        %p740 = pneg %p170
        %p741 = pneg %p167
        %p742 = scmp.lt.s32.totalorder %s38, 1
        %s743 = scalar_select %p742, %s38, 1
        %s744 = smul.addr %s743, 4
        %s745 = smul.addr %s744, 4
        %s746 = scalar_lea.vmem %s5, %s745
        %p747 = pneg %p196
        %p748 = pneg %p193
        %p749 = scmp.lt.s32.totalorder %s38, 1
        %s750 = scalar_select %p749, %s38, 1
        %s751 = scalar_lea.vmem %s6, %s750
        %p752 = pneg %p222
        %p753 = pneg %p219
        %p754 = scmp.lt.s32.totalorder %s38, 1
        %s755 = scalar_select %p754, %s38, 1
        %s756 = smul.addr %s755, 8
        %s757 = smul.addr %s756, 4
        %s758 = scalar_lea.vmem %s7, %s757
        %p759 = pneg %p248
        %p760 = pneg %p245
        %p761 = scmp.lt.s32.totalorder %s38, 1
        %s762 = scalar_select %p761, %s38, 1
        %s763 = scalar_lea.vmem %s8, %s762
        %p764 = pneg %p274
        %p765 = pneg %p271
        %p766 = scmp.lt.s32.totalorder %s38, 1
        %s767 = scalar_select %p766, %s38, 1
        %s768 = scalar_lea.vmem %s9, %s767
        %p769 = pneg %p300
        %p770 = pneg %p297
        %p771 = scmp.lt.s32.totalorder %s38, 1
        %s772 = scalar_select %p771, %s38, 1
        %s773 = scalar_lea.vmem %s10, %s772
        %p774 = pneg %p326
        %p775 = pneg %p323
        %p776 = scmp.lt.s32.totalorder %s38, 1
        %s777 = scalar_select %p776, %s38, 1
        %s778 = scalar_lea.vmem %s11, %s777
        %p779 = pneg %p352
        %p780 = pneg %p349
        %p781 = scmp.lt.s32.totalorder %s38, 1
        %s782 = scalar_select %p781, %s38, 1
        %s783 = scalar_lea.vmem %s12, %s782
        %p784 = pneg %p378
        %p785 = pneg %p375
        %p786 = pneg %p399
        %p787 = pneg %p396
        %p788 = pneg %p420
        %p789 = pneg %p417
        %p790 = pneg %p441
        %p791 = pneg %p438
        %p792 = pneg %p462
        %p793 = pneg %p459
        %p794 = pneg %p483
        %p795 = pneg %p480
        %p796 = pneg %p504
        %p797 = pneg %p501
        %p798 = pneg %p525
        %p799 = pneg %p522
        %p800 = pneg %p546
        %p801 = pneg %p543
        %p802 = pneg %p572
        %p803 = pneg %p569
        %s804 = smul.u32 2, %s37
        %p805 = scmp.lt.s32.totalorder %s804, 1
        %s806 = scalar_select %p805, %s804, 1
        %s807 = smul.addr %s806, 8
        %s808 = scalar_lea.vmem %s0, %s807
        %s809 = smul.u32 2, %s37
        %p810 = scmp.lt.s32.totalorder %s38, 1
        %s811 = scalar_select %p810, %s38, 1
        %s812 = smul.addr %s811, 4
        %s813 = smul.addr %s812, 4
        %s814 = scalar_lea.vmem %s1, %s813
        %p815 = scmp.lt.s32.totalorder %s38, 1
        %s816 = scalar_select %p815, %s38, 1
        %s817 = scalar_lea.vmem %s2, %s816
        %p818 = scmp.lt.s32.totalorder %s38, 1
        %s819 = scalar_select %p818, %s38, 1
        %s820 = smul.addr %s819, 4
        %s821 = smul.addr %s820, 4
        %s822 = scalar_lea.vmem %s3, %s821
        %p823 = scmp.lt.s32.totalorder %s38, 1
        %s824 = scalar_select %p823, %s38, 1
        %s825 = scalar_lea.vmem %s4, %s824
        %p826 = scmp.lt.s32.totalorder %s38, 1
        %s827 = scalar_select %p826, %s38, 1
        %s828 = smul.addr %s827, 4
        %s829 = smul.addr %s828, 4
        %s830 = scalar_lea.vmem %s5, %s829
        %p831 = scmp.lt.s32.totalorder %s38, 1
        %s832 = scalar_select %p831, %s38, 1
        %s833 = scalar_lea.vmem %s6, %s832
        %p834 = scmp.lt.s32.totalorder %s38, 1
        %s835 = scalar_select %p834, %s38, 1
        %s836 = smul.addr %s835, 8
        %s837 = smul.addr %s836, 4
        %s838 = scalar_lea.vmem %s7, %s837
        %p839 = scmp.lt.s32.totalorder %s38, 1
        %s840 = scalar_select %p839, %s38, 1
        %s841 = scalar_lea.vmem %s8, %s840
        %p842 = scmp.lt.s32.totalorder %s38, 1
        %s843 = scalar_select %p842, %s38, 1
        %s844 = scalar_lea.vmem %s9, %s843
        %p845 = scmp.lt.s32.totalorder %s38, 1
        %s846 = scalar_select %p845, %s38, 1
        %s847 = scalar_lea.vmem %s10, %s846
        %p848 = scmp.lt.s32.totalorder %s38, 1
        %s849 = scalar_select %p848, %s38, 1
        %s850 = scalar_lea.vmem %s11, %s849
        %p851 = scmp.lt.s32.totalorder %s38, 1
        %s852 = scalar_select %p851, %s38, 1
        %s853 = scalar_lea.vmem %s12, %s852
        %s854 = smul.u32 2, %s37
        %p856 = scmp.eq.s32.totalorder %s38, 0
        // Predicated region
        $region105: #{vanilla_transformer_forward.1} parent=103 // pred_check
          %p857 = pneg %p856
        $region106: #{vanilla_transformer_forward.1} parent=103 // pred_check_branch
          %859 = sbr.rel (%p857) target = $region108
        $region107: #{vanilla_transformer_forward.1} parent=103 // pred_region
          %v860 = vld [vmem:[%s808] sm:$0xff]
          %v861 = vld [vmem:[%s808 + $0x8] sm:$0xff]
          %vm862 = vcmask 261120
          %863 = vst.msk [vmem:[#allocation2] sm:$0xff] %vm862, %v860
          %864 = vst.msk [vmem:[#allocation2 + $0x8] sm:$0xff] %vm862, %v861
        $region108: #{vanilla_transformer_forward.1} parent=103 // pred_fallthru
          _
        %v865 = vld [vmem:[#allocation2] sm:$0xff]
        %v866 = vld [vmem:[#allocation2 + $0x8] sm:$0xff]
        %v867 = vld [vmem:[%s814] sm:$0xf]
        %v868 = vld [vmem:[%s814 + $0x4] sm:$0xf]
        %v869 = vld [vmem:[%s814 + $0x8] sm:$0xf]
        %v870 = vld [vmem:[%s814 + $0xc] sm:$0xf]
        %v871 = vpack.c.bf16 %v866, %v865
        %v872 = vld [vmem:[%s817] sm:$0x1]
        %v874 = vperm.slane %v872, 0
        %v880 = vunpack.c.l.b16 %v867
        %v881 = vunpack.c.l.b16 %v868
        %v882 = vunpack.c.l.b16 %v869
        %v883 = vunpack.c.l.b16 %v870
        %v884 = vpack.c.b16 %v881, %v880
        %v885 = vpack.c.b16 %v883, %v882
        %vm888 = vcmask 261120
        %v890 = vsel %vm888, %v871, 0
        %892 = vmatpush.bf16.msra.mxu0 0
        %893 = vmatpush.bf16.msra.mxu0 0
        %894 = vmatpush.bf16.msra.mxu0 0
        %895 = vmatpush.bf16.msra.mxu0 0
        %896 = vmatpush.bf16.msra.mxu0 0
        %897 = vmatpush.bf16.msra.mxu0 0
        %898 = vmatpush.bf16.msra.mxu0 %v885
        %899 = vmatpush.bf16.msra.mxu0 %v884
        %900 = vmatmul.bf16.gmra.mxu0 %v890
        %v901 = vpop.f32.mrf.mxu0
        %v902 = vadd.f32 %v874, %v901
        %v903 = vpop.f32.mrf.mxu0
        %v904 = vadd.f32 %v874, %v903
        %905 = vdwg.mxu0
        %v906 = vpack.c.bf16 %v902, %v902
        %v907 = vpack.c.bf16 %v904, %v904
        %v909 = vunpack.c.l.b16 %v906
        %v910 = vpack.c.b16 %v909, %v909
        %911 = vrot.lane.b32.xlu0 %v910, 96
        %v912 = vpop.permute.xlu0 %911
        %vm913 = vcmask 64512
        %v915 = vsel %vm913, %v906, 0
        %v918 = vsel %vm913, %v912, 0
        %920 = vmatpush.bf16.xpose.msra.mxu0 0
        %921 = vmatpush.bf16.xpose.msra.mxu0 0
        %922 = vmatpush.bf16.xpose.msra.mxu0 0
        %923 = vmatpush.bf16.xpose.msra.mxu0 0
        %924 = vmatpush.bf16.xpose.msra.mxu0 0
        %925 = vmatpush.bf16.xpose.msra.mxu0 0
        %926 = vmatpush.bf16.xpose.msra.mxu0 0
        %927 = vmatpush.bf16.xpose.msra.mxu0 %v918
        %928 = vmatmul.bf16.gmra.mxu0 %v915
        %v929 = vpop.f32.mrf.mxu0
        %v930 = vadd.f32 0.0, %v929
        %v931 = vpop.f32.mrf.mxu0
        %932 = vdwg.mxu0
        %v934 = vunpack.c.l.b16 %v907
        %v935 = vpack.c.b16 %v934, %v934
        %936 = vrot.lane.b32.xlu0 %v935, 96
        %v937 = vpop.permute.xlu0 %936
        %v939 = vsel %vm913, %v907, 0
        %v942 = vsel %vm913, %v937, 0
        %944 = vmatpush.bf16.xpose.msra.mxu0 0
        %945 = vmatpush.bf16.xpose.msra.mxu0 0
        %946 = vmatpush.bf16.xpose.msra.mxu0 0
        %947 = vmatpush.bf16.xpose.msra.mxu0 0
        %948 = vmatpush.bf16.xpose.msra.mxu0 0
        %949 = vmatpush.bf16.xpose.msra.mxu0 0
        %950 = vmatpush.bf16.xpose.msra.mxu0 0
        %951 = vmatpush.bf16.xpose.msra.mxu0 %v942
        %952 = vmatmul.bf16.gmra.mxu0 %v939
        %v953 = vpop.f32.mrf.mxu0
        %v954 = vadd.f32 0.0, %v953
        %v955 = vpop.f32.mrf.mxu0
        %956 = vdwg.mxu0
        %v957 = vmul.f32 %v930, 0.35355338
        %v958 = vmul.f32 %v954, 0.35355338
        %v959 = vsel %vm913, %v957, -inf
        %960 = vmax.xlane.f32.xlu0 %v959
        %v961 = vpop.xlane.xlu0 %960
        %v962 = vsel %vm913, %v958, -inf
        %963 = vmax.xlane.f32.xlu0 %v962
        %v964 = vpop.xlane.xlu0 %963
        %v965 = vsub.f32 %v957, %v961
        %v966 = vsub.f32 %v958, %v964
        %v967 = vmul.f32 %v965, 1.442695
        %v968 = vpow.pop %v967
        %v969 = vmul.f32 %v966, 1.442695
        %v970 = vpow.pop %v969
        %v971 = vsel %vm913, %v968, 0.0
        %972 = vadd.xlane.f32.xlu0 %v971
        %v973 = vpop.xlane.xlu0 %972
        %v974 = vsel %vm913, %v970, 0.0
        %975 = vadd.xlane.f32.xlu0 %v974
        %v976 = vpop.xlane.xlu0 %975
        %v977 = vrcp.pop %v973
        %v978 = vmul.f32 %v973, %v977
        %v979 = vsub.f32 1.0, %v978
        %v980 = vmul.f32 %v977, %v979
        %v981 = vadd.f32 %v977, %v980
        %vm982 = vweird.f32 %v973
        %vm983 = vweird.f32 %v977
        %vm984 = vmor %vm982, %vm983
        %v985 = vsel %vm984, %v977, %v981
        %v986 = vand.u32 2147483647, %v973
        %vm987 = vcmp.eq.f32.partialorder %v986, 8.507059e+37
        %v988 = vand.u32 %v973, 2147483648
        %v989 = vor.u32 1.1754944e-38, %v988
        %v990 = vsel %vm987, %v989, %v985
        %v991 = vmul.f32 %v968, %v990
        %v992 = vrcp.pop %v976
        %v993 = vmul.f32 %v976, %v992
        %v994 = vsub.f32 1.0, %v993
        %v995 = vmul.f32 %v992, %v994
        %v996 = vadd.f32 %v992, %v995
        %vm997 = vweird.f32 %v976
        %vm998 = vweird.f32 %v992
        %vm999 = vmor %vm997, %vm998
        %v1000 = vsel %vm999, %v992, %v996
        %v1001 = vand.u32 2147483647, %v976
        %vm1002 = vcmp.eq.f32.partialorder %v1001, 8.507059e+37
        %v1003 = vand.u32 %v976, 2147483648
        %v1004 = vor.u32 1.1754944e-38, %v1003
        %v1005 = vsel %vm1002, %v1004, %v1000
        %v1006 = vmul.f32 %v970, %v1005
        %v1007 = vpack.c.bf16 %v991, %v991
        %v1008 = vpack.c.bf16 %v1006, %v1006
        %1009 = vrot.lane.b32.xlu0 %v910, 64
        %v1010 = vpop.permute.xlu0 %1009
        %v1012 = vsel %vm913, %v1007, 0
        %vm1014 = vcmask 1043456
        %v1016 = vsel %vm1014, %v1010, 0
        %1018 = vmatpush.bf16.msra.mxu0 0
        %1019 = vmatpush.bf16.msra.mxu0 0
        %1020 = vmatpush.bf16.msra.mxu0 0
        %1021 = vmatpush.bf16.msra.mxu0 0
        %1022 = vmatpush.bf16.msra.mxu0 0
        %1023 = vmatpush.bf16.msra.mxu0 0
        %1024 = vmatpush.bf16.msra.mxu0 0
        %1025 = vmatpush.bf16.msra.mxu0 %v1016
        %1026 = vmatmul.bf16.gmra.mxu0 %v1012
        %v1027 = vpop.f32.mrf.mxu0
        %v1028 = vadd.f32 0.0, %v1027
        %v1029 = vpop.f32.mrf.mxu0
        %1030 = vdwg.mxu0
        %1031 = vrot.lane.b32.xlu0 %v935, 64
        %v1032 = vpop.permute.xlu0 %1031
        %v1034 = vsel %vm913, %v1008, 0
        %v1037 = vsel %vm1014, %v1032, 0
        %1039 = vmatpush.bf16.msra.mxu0 0
        %1040 = vmatpush.bf16.msra.mxu0 0
        %1041 = vmatpush.bf16.msra.mxu0 0
        %1042 = vmatpush.bf16.msra.mxu0 0
        %1043 = vmatpush.bf16.msra.mxu0 0
        %1044 = vmatpush.bf16.msra.mxu0 0
        %1045 = vmatpush.bf16.msra.mxu0 0
        %1046 = vmatpush.bf16.msra.mxu0 %v1037
        %1047 = vmatmul.bf16.gmra.mxu0 %v1034
        %v1048 = vpop.f32.mrf.mxu0
        %v1049 = vadd.f32 0.0, %v1048
        %v1050 = vpop.f32.mrf.mxu0
        %1051 = vdwg.mxu0
        %v1052 = vld [vmem:[%s822] sm:$0xf]
        %v1053 = vpack.c.bf16 %v1049, %v1028
        %1054 = vrot.lane.b32.xlu0 %v910, 120
        %v1055 = vpop.permute.xlu0 %1054
        %1056 = vrot.lane.b32.xlu0 %v910, 88
        %v1057 = vpop.permute.xlu0 %1056
        %v1059 = vsel %vm913, %v1055, 0
        %v1062 = vsel %vm913, %v1057, 0
        %1064 = vmatpush.bf16.xpose.msra.mxu0 0
        %1065 = vmatpush.bf16.xpose.msra.mxu0 0
        %1066 = vmatpush.bf16.xpose.msra.mxu0 0
        %1067 = vmatpush.bf16.xpose.msra.mxu0 0
        %1068 = vmatpush.bf16.xpose.msra.mxu0 0
        %1069 = vmatpush.bf16.xpose.msra.mxu0 0
        %1070 = vmatpush.bf16.xpose.msra.mxu0 0
        %1071 = vmatpush.bf16.xpose.msra.mxu0 %v1062
        %1072 = vmatmul.bf16.gmra.mxu0 %v1059
        %v1073 = vpop.f32.mrf.mxu0
        %v1074 = vadd.f32 0.0, %v1073
        %v1075 = vpop.f32.mrf.mxu0
        %1076 = vdwg.mxu0
        %1077 = vrot.lane.b32.xlu0 %v935, 120
        %v1078 = vpop.permute.xlu0 %1077
        %1079 = vrot.lane.b32.xlu0 %v935, 88
        %v1080 = vpop.permute.xlu0 %1079
        %v1082 = vsel %vm913, %v1078, 0
        %v1085 = vsel %vm913, %v1080, 0
        %1087 = vmatpush.bf16.xpose.msra.mxu0 0
        %1088 = vmatpush.bf16.xpose.msra.mxu0 0
        %1089 = vmatpush.bf16.xpose.msra.mxu0 0
        %1090 = vmatpush.bf16.xpose.msra.mxu0 0
        %1091 = vmatpush.bf16.xpose.msra.mxu0 0
        %1092 = vmatpush.bf16.xpose.msra.mxu0 0
        %1093 = vmatpush.bf16.xpose.msra.mxu0 0
        %1094 = vmatpush.bf16.xpose.msra.mxu0 %v1085
        %1095 = vmatmul.bf16.gmra.mxu0 %v1082
        %v1096 = vpop.f32.mrf.mxu0
        %v1097 = vadd.f32 0.0, %v1096
        %v1098 = vpop.f32.mrf.mxu0
        %1099 = vdwg.mxu0
        %v1100 = vmul.f32 %v1074, 0.35355338
        %v1101 = vmul.f32 %v1097, 0.35355338
        %v1102 = vsel %vm913, %v1100, -inf
        %1103 = vmax.xlane.f32.xlu0 %v1102
        %v1104 = vpop.xlane.xlu0 %1103
        %v1105 = vsel %vm913, %v1101, -inf
        %1106 = vmax.xlane.f32.xlu0 %v1105
        %v1107 = vpop.xlane.xlu0 %1106
        %v1108 = vsub.f32 %v1100, %v1104
        %v1109 = vsub.f32 %v1101, %v1107
        %v1110 = vmul.f32 %v1108, 1.442695
        %v1111 = vpow.pop %v1110
        %v1112 = vmul.f32 %v1109, 1.442695
        %v1113 = vpow.pop %v1112
        %v1114 = vsel %vm913, %v1111, 0.0
        %1115 = vadd.xlane.f32.xlu0 %v1114
        %v1116 = vpop.xlane.xlu0 %1115
        %v1117 = vsel %vm913, %v1113, 0.0
        %1118 = vadd.xlane.f32.xlu0 %v1117
        %v1119 = vpop.xlane.xlu0 %1118
        %v1120 = vrcp.pop %v1116
        %v1121 = vmul.f32 %v1116, %v1120
        %v1122 = vsub.f32 1.0, %v1121
        %v1123 = vmul.f32 %v1120, %v1122
        %v1124 = vadd.f32 %v1120, %v1123
        %vm1125 = vweird.f32 %v1116
        %vm1126 = vweird.f32 %v1120
        %vm1127 = vmor %vm1125, %vm1126
        %v1128 = vsel %vm1127, %v1120, %v1124
        %v1129 = vand.u32 2147483647, %v1116
        %vm1130 = vcmp.eq.f32.partialorder %v1129, 8.507059e+37
        %v1131 = vand.u32 %v1116, 2147483648
        %v1132 = vor.u32 1.1754944e-38, %v1131
        %v1133 = vsel %vm1130, %v1132, %v1128
        %v1134 = vmul.f32 %v1111, %v1133
        %v1135 = vrcp.pop %v1119
        %v1136 = vmul.f32 %v1119, %v1135
        %v1137 = vsub.f32 1.0, %v1136
        %v1138 = vmul.f32 %v1135, %v1137
        %v1139 = vadd.f32 %v1135, %v1138
        %vm1140 = vweird.f32 %v1119
        %vm1141 = vweird.f32 %v1135
        %vm1142 = vmor %vm1140, %vm1141
        %v1143 = vsel %vm1142, %v1135, %v1139
        %v1144 = vand.u32 2147483647, %v1119
        %vm1145 = vcmp.eq.f32.partialorder %v1144, 8.507059e+37
        %v1146 = vand.u32 %v1119, 2147483648
        %v1147 = vor.u32 1.1754944e-38, %v1146
        %v1148 = vsel %vm1145, %v1147, %v1143
        %v1149 = vmul.f32 %v1113, %v1148
        %v1150 = vpack.c.bf16 %v1134, %v1134
        %v1151 = vpack.c.bf16 %v1149, %v1149
        %1152 = vrot.lane.b32.xlu0 %v910, 56
        %v1153 = vpop.permute.xlu0 %1152
        %v1155 = vsel %vm913, %v1150, 0
        %v1158 = vsel %vm1014, %v1153, 0
        %1160 = vmatpush.bf16.msra.mxu0 0
        %1161 = vmatpush.bf16.msra.mxu0 0
        %1162 = vmatpush.bf16.msra.mxu0 0
        %1163 = vmatpush.bf16.msra.mxu0 0
        %1164 = vmatpush.bf16.msra.mxu0 0
        %1165 = vmatpush.bf16.msra.mxu0 0
        %1166 = vmatpush.bf16.msra.mxu0 0
        %1167 = vmatpush.bf16.msra.mxu0 %v1158
        %1168 = vmatmul.bf16.gmra.mxu0 %v1155
        %v1169 = vpop.f32.mrf.mxu0
        %v1170 = vadd.f32 0.0, %v1169
        %v1171 = vpop.f32.mrf.mxu0
        %1172 = vdwg.mxu0
        %1173 = vrot.lane.b32.xlu0 %v935, 56
        %v1174 = vpop.permute.xlu0 %1173
        %v1176 = vsel %vm913, %v1151, 0
        %v1179 = vsel %vm1014, %v1174, 0
        %1181 = vmatpush.bf16.msra.mxu0 0
        %1182 = vmatpush.bf16.msra.mxu0 0
        %1183 = vmatpush.bf16.msra.mxu0 0
        %1184 = vmatpush.bf16.msra.mxu0 0
        %1185 = vmatpush.bf16.msra.mxu0 0
        %1186 = vmatpush.bf16.msra.mxu0 0
        %1187 = vmatpush.bf16.msra.mxu0 0
        %1188 = vmatpush.bf16.msra.mxu0 %v1179
        %1189 = vmatmul.bf16.gmra.mxu0 %v1176
        %v1190 = vpop.f32.mrf.mxu0
        %v1191 = vadd.f32 0.0, %v1190
        %v1192 = vpop.f32.mrf.mxu0
        %1193 = vdwg.mxu0
        %v1194 = vld [vmem:[%s822 + $0x4] sm:$0xf]
        %v1195 = vpack.c.bf16 %v1191, %v1170
        %v1197 = vsel %vm913, %v1195, 0
        %v1200 = vsel %vm1014, %v1194, 0
        %1202 = vmatpush.bf16.msra.mxu0 0
        %1203 = vmatpush.bf16.msra.mxu0 0
        %1204 = vmatpush.bf16.msra.mxu0 0
        %1205 = vmatpush.bf16.msra.mxu0 0
        %1206 = vmatpush.bf16.msra.mxu0 0
        %1207 = vmatpush.bf16.msra.mxu0 0
        %1208 = vmatpush.bf16.msra.mxu0 0
        %1209 = vmatpush.bf16.msra.mxu0 %v1200
        %1210 = vmatmul.bf16.gmra.mxu0 %v1197
        %v1211 = vpop.f32.mrf.mxu0
        %v1212 = vadd.f32 0.0, %v1211
        %v1213 = vpop.f32.mrf.mxu0
        %v1214 = vadd.f32 0.0, %v1213
        %1215 = vdwg.mxu0
        %v1217 = vsel %vm913, %v1053, 0
        %v1220 = vsel %vm1014, %v1052, 0
        %1222 = vmatpush.bf16.msra.mxu0 0
        %1223 = vmatpush.bf16.msra.mxu0 0
        %1224 = vmatpush.bf16.msra.mxu0 0
        %1225 = vmatpush.bf16.msra.mxu0 0
        %1226 = vmatpush.bf16.msra.mxu0 0
        %1227 = vmatpush.bf16.msra.mxu0 0
        %1228 = vmatpush.bf16.msra.mxu0 0
        %1229 = vmatpush.bf16.msra.mxu0 %v1220
        %1230 = vmatmul.bf16.gmra.mxu0 %v1217
        %v1231 = vpop.f32.mrf.mxu0
        %v1232 = vadd.f32 %v1212, %v1231
        %v1233 = vpop.f32.mrf.mxu0
        %v1234 = vadd.f32 %v1214, %v1233
        %1235 = vdwg.mxu0
        %1236 = vrot.lane.b32.xlu0 %v910, 112
        %v1237 = vpop.permute.xlu0 %1236
        %1238 = vrot.lane.b32.xlu0 %v910, 80
        %v1239 = vpop.permute.xlu0 %1238
        %v1241 = vsel %vm913, %v1237, 0
        %v1244 = vsel %vm913, %v1239, 0
        %1246 = vmatpush.bf16.xpose.msra.mxu0 0
        %1247 = vmatpush.bf16.xpose.msra.mxu0 0
        %1248 = vmatpush.bf16.xpose.msra.mxu0 0
        %1249 = vmatpush.bf16.xpose.msra.mxu0 0
        %1250 = vmatpush.bf16.xpose.msra.mxu0 0
        %1251 = vmatpush.bf16.xpose.msra.mxu0 0
        %1252 = vmatpush.bf16.xpose.msra.mxu0 0
        %1253 = vmatpush.bf16.xpose.msra.mxu0 %v1244
        %1254 = vmatmul.bf16.gmra.mxu0 %v1241
        %v1255 = vpop.f32.mrf.mxu0
        %v1256 = vadd.f32 0.0, %v1255
        %v1257 = vpop.f32.mrf.mxu0
        %1258 = vdwg.mxu0
        %1259 = vrot.lane.b32.xlu0 %v935, 112
        %v1260 = vpop.permute.xlu0 %1259
        %1261 = vrot.lane.b32.xlu0 %v935, 80
        %v1262 = vpop.permute.xlu0 %1261
        %v1264 = vsel %vm913, %v1260, 0
        %v1267 = vsel %vm913, %v1262, 0
        %1269 = vmatpush.bf16.xpose.msra.mxu0 0
        %1270 = vmatpush.bf16.xpose.msra.mxu0 0
        %1271 = vmatpush.bf16.xpose.msra.mxu0 0
        %1272 = vmatpush.bf16.xpose.msra.mxu0 0
        %1273 = vmatpush.bf16.xpose.msra.mxu0 0
        %1274 = vmatpush.bf16.xpose.msra.mxu0 0
        %1275 = vmatpush.bf16.xpose.msra.mxu0 0
        %1276 = vmatpush.bf16.xpose.msra.mxu0 %v1267
        %1277 = vmatmul.bf16.gmra.mxu0 %v1264
        %v1278 = vpop.f32.mrf.mxu0
        %v1279 = vadd.f32 0.0, %v1278
        %v1280 = vpop.f32.mrf.mxu0
        %1281 = vdwg.mxu0
        %v1282 = vmul.f32 %v1256, 0.35355338
        %v1283 = vmul.f32 %v1279, 0.35355338
        %v1284 = vsel %vm913, %v1282, -inf
        %1285 = vmax.xlane.f32.xlu0 %v1284
        %v1286 = vpop.xlane.xlu0 %1285
        %v1287 = vsel %vm913, %v1283, -inf
        %1288 = vmax.xlane.f32.xlu0 %v1287
        %v1289 = vpop.xlane.xlu0 %1288
        %v1290 = vsub.f32 %v1282, %v1286
        %v1291 = vsub.f32 %v1283, %v1289
        %v1292 = vmul.f32 %v1290, 1.442695
        %v1293 = vpow.pop %v1292
        %v1294 = vmul.f32 %v1291, 1.442695
        %v1295 = vpow.pop %v1294
        %v1296 = vsel %vm913, %v1293, 0.0
        %1297 = vadd.xlane.f32.xlu0 %v1296
        %v1298 = vpop.xlane.xlu0 %1297
        %v1299 = vsel %vm913, %v1295, 0.0
        %1300 = vadd.xlane.f32.xlu0 %v1299
        %v1301 = vpop.xlane.xlu0 %1300
        %v1302 = vrcp.pop %v1298
        %v1303 = vmul.f32 %v1298, %v1302
        %v1304 = vsub.f32 1.0, %v1303
        %v1305 = vmul.f32 %v1302, %v1304
        %v1306 = vadd.f32 %v1302, %v1305
        %vm1307 = vweird.f32 %v1298
        %vm1308 = vweird.f32 %v1302
        %vm1309 = vmor %vm1307, %vm1308
        %v1310 = vsel %vm1309, %v1302, %v1306
        %v1311 = vand.u32 2147483647, %v1298
        %vm1312 = vcmp.eq.f32.partialorder %v1311, 8.507059e+37
        %v1313 = vand.u32 %v1298, 2147483648
        %v1314 = vor.u32 1.1754944e-38, %v1313
        %v1315 = vsel %vm1312, %v1314, %v1310
        %v1316 = vmul.f32 %v1293, %v1315
        %v1317 = vrcp.pop %v1301
        %v1318 = vmul.f32 %v1301, %v1317
        %v1319 = vsub.f32 1.0, %v1318
        %v1320 = vmul.f32 %v1317, %v1319
        %v1321 = vadd.f32 %v1317, %v1320
        %vm1322 = vweird.f32 %v1301
        %vm1323 = vweird.f32 %v1317
        %vm1324 = vmor %vm1322, %vm1323
        %v1325 = vsel %vm1324, %v1317, %v1321
        %v1326 = vand.u32 2147483647, %v1301
        %vm1327 = vcmp.eq.f32.partialorder %v1326, 8.507059e+37
        %v1328 = vand.u32 %v1301, 2147483648
        %v1329 = vor.u32 1.1754944e-38, %v1328
        %v1330 = vsel %vm1327, %v1329, %v1325
        %v1331 = vmul.f32 %v1295, %v1330
        %v1332 = vpack.c.bf16 %v1316, %v1316
        %v1333 = vpack.c.bf16 %v1331, %v1331
        %1334 = vrot.lane.b32.xlu0 %v910, 48
        %v1335 = vpop.permute.xlu0 %1334
        %v1337 = vsel %vm913, %v1332, 0
        %v1340 = vsel %vm1014, %v1335, 0
        %1342 = vmatpush.bf16.msra.mxu0 0
        %1343 = vmatpush.bf16.msra.mxu0 0
        %1344 = vmatpush.bf16.msra.mxu0 0
        %1345 = vmatpush.bf16.msra.mxu0 0
        %1346 = vmatpush.bf16.msra.mxu0 0
        %1347 = vmatpush.bf16.msra.mxu0 0
        %1348 = vmatpush.bf16.msra.mxu0 0
        %1349 = vmatpush.bf16.msra.mxu0 %v1340
        %1350 = vmatmul.bf16.gmra.mxu0 %v1337
        %v1351 = vpop.f32.mrf.mxu0
        %v1352 = vadd.f32 0.0, %v1351
        %v1353 = vpop.f32.mrf.mxu0
        %1354 = vdwg.mxu0
        %1355 = vrot.lane.b32.xlu0 %v935, 48
        %v1356 = vpop.permute.xlu0 %1355
        %v1358 = vsel %vm913, %v1333, 0
        %v1361 = vsel %vm1014, %v1356, 0
        %1363 = vmatpush.bf16.msra.mxu0 0
        %1364 = vmatpush.bf16.msra.mxu0 0
        %1365 = vmatpush.bf16.msra.mxu0 0
        %1366 = vmatpush.bf16.msra.mxu0 0
        %1367 = vmatpush.bf16.msra.mxu0 0
        %1368 = vmatpush.bf16.msra.mxu0 0
        %1369 = vmatpush.bf16.msra.mxu0 0
        %1370 = vmatpush.bf16.msra.mxu0 %v1361
        %1371 = vmatmul.bf16.gmra.mxu0 %v1358
        %v1372 = vpop.f32.mrf.mxu0
        %v1373 = vadd.f32 0.0, %v1372
        %v1374 = vpop.f32.mrf.mxu0
        %1375 = vdwg.mxu0
        %v1376 = vld [vmem:[%s822 + $0x8] sm:$0xf]
        %v1377 = vpack.c.bf16 %v1373, %v1352
        %v1379 = vsel %vm913, %v1377, 0
        %v1382 = vsel %vm1014, %v1376, 0
        %1384 = vmatpush.bf16.msra.mxu0 0
        %1385 = vmatpush.bf16.msra.mxu0 0
        %1386 = vmatpush.bf16.msra.mxu0 0
        %1387 = vmatpush.bf16.msra.mxu0 0
        %1388 = vmatpush.bf16.msra.mxu0 0
        %1389 = vmatpush.bf16.msra.mxu0 0
        %1390 = vmatpush.bf16.msra.mxu0 0
        %1391 = vmatpush.bf16.msra.mxu0 %v1382
        %1392 = vmatmul.bf16.gmra.mxu0 %v1379
        %v1393 = vpop.f32.mrf.mxu0
        %v1394 = vadd.f32 0.0, %v1393
        %v1395 = vpop.f32.mrf.mxu0
        %v1396 = vadd.f32 0.0, %v1395
        %1397 = vdwg.mxu0
        %v1398 = vadd.f32 %v1232, %v1394
        %v1399 = vadd.f32 %v1234, %v1396
        %1400 = vrot.lane.b32.xlu0 %v910, 104
        %v1401 = vpop.permute.xlu0 %1400
        %1402 = vrot.lane.b32.xlu0 %v910, 72
        %v1403 = vpop.permute.xlu0 %1402
        %v1405 = vsel %vm913, %v1401, 0
        %v1408 = vsel %vm913, %v1403, 0
        %1410 = vmatpush.bf16.xpose.msra.mxu0 0
        %1411 = vmatpush.bf16.xpose.msra.mxu0 0
        %1412 = vmatpush.bf16.xpose.msra.mxu0 0
        %1413 = vmatpush.bf16.xpose.msra.mxu0 0
        %1414 = vmatpush.bf16.xpose.msra.mxu0 0
        %1415 = vmatpush.bf16.xpose.msra.mxu0 0
        %1416 = vmatpush.bf16.xpose.msra.mxu0 0
        %1417 = vmatpush.bf16.xpose.msra.mxu0 %v1408
        %1418 = vmatmul.bf16.gmra.mxu0 %v1405
        %v1419 = vpop.f32.mrf.mxu0
        %v1420 = vadd.f32 0.0, %v1419
        %v1421 = vpop.f32.mrf.mxu0
        %1422 = vdwg.mxu0
        %1423 = vrot.lane.b32.xlu0 %v935, 104
        %v1424 = vpop.permute.xlu0 %1423
        %1425 = vrot.lane.b32.xlu0 %v935, 72
        %v1426 = vpop.permute.xlu0 %1425
        %v1428 = vsel %vm913, %v1424, 0
        %v1431 = vsel %vm913, %v1426, 0
        %1433 = vmatpush.bf16.xpose.msra.mxu0 0
        %1434 = vmatpush.bf16.xpose.msra.mxu0 0
        %1435 = vmatpush.bf16.xpose.msra.mxu0 0
        %1436 = vmatpush.bf16.xpose.msra.mxu0 0
        %1437 = vmatpush.bf16.xpose.msra.mxu0 0
        %1438 = vmatpush.bf16.xpose.msra.mxu0 0
        %1439 = vmatpush.bf16.xpose.msra.mxu0 0
        %1440 = vmatpush.bf16.xpose.msra.mxu0 %v1431
        %1441 = vmatmul.bf16.gmra.mxu0 %v1428
        %v1442 = vpop.f32.mrf.mxu0
        %v1443 = vadd.f32 0.0, %v1442
        %v1444 = vpop.f32.mrf.mxu0
        %1445 = vdwg.mxu0
        %v1446 = vmul.f32 %v1420, 0.35355338
        %v1447 = vmul.f32 %v1443, 0.35355338
        %v1448 = vsel %vm913, %v1446, -inf
        %1449 = vmax.xlane.f32.xlu0 %v1448
        %v1450 = vpop.xlane.xlu0 %1449
        %v1451 = vsel %vm913, %v1447, -inf
        %1452 = vmax.xlane.f32.xlu0 %v1451
        %v1453 = vpop.xlane.xlu0 %1452
        %v1454 = vsub.f32 %v1446, %v1450
        %v1455 = vsub.f32 %v1447, %v1453
        %v1456 = vmul.f32 %v1454, 1.442695
        %v1457 = vpow.pop %v1456
        %v1458 = vmul.f32 %v1455, 1.442695
        %v1459 = vpow.pop %v1458
        %v1460 = vsel %vm913, %v1457, 0.0
        %1461 = vadd.xlane.f32.xlu0 %v1460
        %v1462 = vpop.xlane.xlu0 %1461
        %v1463 = vsel %vm913, %v1459, 0.0
        %1464 = vadd.xlane.f32.xlu0 %v1463
        %v1465 = vpop.xlane.xlu0 %1464
        %v1466 = vrcp.pop %v1462
        %v1467 = vmul.f32 %v1462, %v1466
        %v1468 = vsub.f32 1.0, %v1467
        %v1469 = vmul.f32 %v1466, %v1468
        %v1470 = vadd.f32 %v1466, %v1469
        %vm1471 = vweird.f32 %v1462
        %vm1472 = vweird.f32 %v1466
        %vm1473 = vmor %vm1471, %vm1472
        %v1474 = vsel %vm1473, %v1466, %v1470
        %v1475 = vand.u32 2147483647, %v1462
        %vm1476 = vcmp.eq.f32.partialorder %v1475, 8.507059e+37
        %v1477 = vand.u32 %v1462, 2147483648
        %v1478 = vor.u32 1.1754944e-38, %v1477
        %v1479 = vsel %vm1476, %v1478, %v1474
        %v1480 = vmul.f32 %v1457, %v1479
        %v1481 = vrcp.pop %v1465
        %v1482 = vmul.f32 %v1465, %v1481
        %v1483 = vsub.f32 1.0, %v1482
        %v1484 = vmul.f32 %v1481, %v1483
        %v1485 = vadd.f32 %v1481, %v1484
        %vm1486 = vweird.f32 %v1465
        %vm1487 = vweird.f32 %v1481
        %vm1488 = vmor %vm1486, %vm1487
        %v1489 = vsel %vm1488, %v1481, %v1485
        %v1490 = vand.u32 2147483647, %v1465
        %vm1491 = vcmp.eq.f32.partialorder %v1490, 8.507059e+37
        %v1492 = vand.u32 %v1465, 2147483648
        %v1493 = vor.u32 1.1754944e-38, %v1492
        %v1494 = vsel %vm1491, %v1493, %v1489
        %v1495 = vmul.f32 %v1459, %v1494
        %v1496 = vpack.c.bf16 %v1480, %v1480
        %v1497 = vpack.c.bf16 %v1495, %v1495
        %1498 = vrot.lane.b32.xlu0 %v910, 40
        %v1499 = vpop.permute.xlu0 %1498
        %v1501 = vsel %vm913, %v1496, 0
        %v1504 = vsel %vm1014, %v1499, 0
        %1506 = vmatpush.bf16.msra.mxu0 0
        %1507 = vmatpush.bf16.msra.mxu0 0
        %1508 = vmatpush.bf16.msra.mxu0 0
        %1509 = vmatpush.bf16.msra.mxu0 0
        %1510 = vmatpush.bf16.msra.mxu0 0
        %1511 = vmatpush.bf16.msra.mxu0 0
        %1512 = vmatpush.bf16.msra.mxu0 0
        %1513 = vmatpush.bf16.msra.mxu0 %v1504
        %1514 = vmatmul.bf16.gmra.mxu0 %v1501
        %v1515 = vpop.f32.mrf.mxu0
        %v1516 = vadd.f32 0.0, %v1515
        %v1517 = vpop.f32.mrf.mxu0
        %1518 = vdwg.mxu0
        %1519 = vrot.lane.b32.xlu0 %v935, 40
        %v1520 = vpop.permute.xlu0 %1519
        %v1522 = vsel %vm913, %v1497, 0
        %v1525 = vsel %vm1014, %v1520, 0
        %1527 = vmatpush.bf16.msra.mxu0 0
        %1528 = vmatpush.bf16.msra.mxu0 0
        %1529 = vmatpush.bf16.msra.mxu0 0
        %1530 = vmatpush.bf16.msra.mxu0 0
        %1531 = vmatpush.bf16.msra.mxu0 0
        %1532 = vmatpush.bf16.msra.mxu0 0
        %1533 = vmatpush.bf16.msra.mxu0 0
        %1534 = vmatpush.bf16.msra.mxu0 %v1525
        %1535 = vmatmul.bf16.gmra.mxu0 %v1522
        %v1536 = vpop.f32.mrf.mxu0
        %v1537 = vadd.f32 0.0, %v1536
        %v1538 = vpop.f32.mrf.mxu0
        %1539 = vdwg.mxu0
        %v1540 = vld [vmem:[%s822 + $0xc] sm:$0xf]
        %v1541 = vpack.c.bf16 %v1537, %v1516
        %v1543 = vsel %vm913, %v1541, 0
        %v1546 = vsel %vm1014, %v1540, 0
        %1548 = vmatpush.bf16.msra.mxu0 0
        %1549 = vmatpush.bf16.msra.mxu0 0
        %1550 = vmatpush.bf16.msra.mxu0 0
        %1551 = vmatpush.bf16.msra.mxu0 0
        %1552 = vmatpush.bf16.msra.mxu0 0
        %1553 = vmatpush.bf16.msra.mxu0 0
        %1554 = vmatpush.bf16.msra.mxu0 0
        %1555 = vmatpush.bf16.msra.mxu0 %v1546
        %1556 = vmatmul.bf16.gmra.mxu0 %v1543
        %v1557 = vpop.f32.mrf.mxu0
        %v1558 = vadd.f32 0.0, %v1557
        %v1559 = vpop.f32.mrf.mxu0
        %v1560 = vadd.f32 0.0, %v1559
        %1561 = vdwg.mxu0
        %v1562 = vadd.f32 %v1398, %v1558
        %v1563 = vadd.f32 %v1399, %v1560
        %v1564 = vld [vmem:[%s825] sm:$0x1]
        %v1566 = vperm.slane %v1564, 0
        %v1568 = vadd.f32 %v1562, %v1566
        %v1569 = vadd.f32 %v1563, %v1566
        %v1570 = vadd.f32 %v865, %v1568
        %v1571 = vadd.f32 %v866, %v1569
        %v1572 = vld [vmem:[%s844] sm:$0x1]
        %v1573 = vld [vmem:[%s847] sm:$0x1]
        %v1574 = vsel %vm888, %v1570, 0.0
        %1575 = vadd.xlane.f32.xlu0 %v1574
        %v1576 = vpop.xlane.xlu0 %1575
        %v1577 = vsel %vm888, %v1571, 0.0
        %1578 = vadd.xlane.f32.xlu0 %v1577
        %v1579 = vpop.xlane.xlu0 %1578
        %v1580 = vrcp.pop 32.0
        %v1581 = vmul.f32 32.0, %v1580
        %v1582 = vsub.f32 1.0, %v1581
        %v1583 = vmul.f32 %v1580, %v1582
        %v1584 = vadd.f32 %v1580, %v1583
        %vm1585 = vweird.f32 %v1580
        %v1586 = vsel %vm1585, %v1580, %v1584
        %v1587 = vmul.f32 %v1576, %v1586
        %v1588 = vmul.f32 %v1579, %v1586
        %v1589 = vsub.f32 %v1570, %v1587
        %v1590 = vsub.f32 %v1571, %v1588
        %v1591 = vmul.f32 %v1589, %v1589
        %v1592 = vmul.f32 %v1590, %v1590
        %v1593 = vsel %vm888, %v1591, 0.0
        %1594 = vadd.xlane.f32.xlu0 %v1593
        %v1595 = vpop.xlane.xlu0 %1594
        %v1596 = vsel %vm888, %v1592, 0.0
        %1597 = vadd.xlane.f32.xlu0 %v1596
        %v1598 = vpop.xlane.xlu0 %1597
        %v1599 = vmul.f32 %v1595, %v1586
        %v1600 = vmul.f32 %v1598, %v1586
        %v1601 = vadd.f32 %v1599, 1e-05
        %v1602 = vadd.f32 %v1600, 1e-05
        %v1603 = vrsqrt.pop %v1601
        %v1604 = vmul.f32 %v1603, %v1601
        %v1605 = vmul.f32 %v1604, %v1603
        %v1606 = vmul.f32 0.5, %v1605
        %v1607 = vsub.f32 1.5, %v1606
        %v1608 = vmul.f32 %v1603, %v1607
        %vm1609 = vweird.f32 %v1601
        %vm1610 = vweird.f32 %v1603
        %vm1611 = vmor %vm1609, %vm1610
        %v1612 = vsel %vm1611, %v1603, %v1608
        %v1613 = vrsqrt.pop %v1602
        %v1614 = vmul.f32 %v1613, %v1602
        %v1615 = vmul.f32 %v1614, %v1613
        %v1616 = vmul.f32 0.5, %v1615
        %v1617 = vsub.f32 1.5, %v1616
        %v1618 = vmul.f32 %v1613, %v1617
        %vm1619 = vweird.f32 %v1602
        %vm1620 = vweird.f32 %v1613
        %vm1621 = vmor %vm1619, %vm1620
        %v1622 = vsel %vm1621, %v1613, %v1618
        %v1623 = vmul.f32 %v1589, %v1612
        %v1624 = vmul.f32 %v1590, %v1622
        %v1626 = vperm.slane %v1572, 0
        %v1628 = vmul.f32 %v1623, %v1626
        %v1629 = vmul.f32 %v1624, %v1626
        %v1631 = vperm.slane %v1573, 0
        %v1633 = vadd.f32 %v1628, %v1631
        %v1634 = vadd.f32 %v1629, %v1631
        %v1635 = vld [vmem:[%s830] sm:$0xf]
        %v1636 = vld [vmem:[%s830 + $0x4] sm:$0xf]
        %v1637 = vld [vmem:[%s830 + $0x8] sm:$0xf]
        %v1638 = vld [vmem:[%s830 + $0xc] sm:$0xf]
        %v1639 = vpack.c.bf16 %v1634, %v1633
        %v1640 = vld [vmem:[%s833] sm:$0x1]
        %v1642 = vperm.slane %v1640, 0
        %v1648 = vunpack.c.l.b16 %v1635
        %v1649 = vunpack.c.l.b16 %v1636
        %v1650 = vunpack.c.l.b16 %v1637
        %v1651 = vunpack.c.l.b16 %v1638
        %v1652 = vpack.c.b16 %v1649, %v1648
        %v1653 = vpack.c.b16 %v1651, %v1650
        %v1657 = vsel %vm888, %v1639, 0
        %1659 = vmatpush.bf16.msra.mxu0 0
        %1660 = vmatpush.bf16.msra.mxu0 0
        %1661 = vmatpush.bf16.msra.mxu0 0
        %1662 = vmatpush.bf16.msra.mxu0 0
        %1663 = vmatpush.bf16.msra.mxu0 0
        %1664 = vmatpush.bf16.msra.mxu0 0
        %1665 = vmatpush.bf16.msra.mxu0 %v1653
        %1666 = vmatpush.bf16.msra.mxu0 %v1652
        %1667 = vmatmul.bf16.gmra.mxu0 %v1657
        %v1668 = vpop.f32.mrf.mxu0
        %v1669 = vadd.f32 %v1642, %v1668
        %v1670 = vpop.f32.mrf.mxu0
        %v1671 = vadd.f32 %v1642, %v1670
        %1672 = vdwg.mxu0
        %v1673 = vmax.f32 %v1669, 0.0
        %v1674 = vmax.f32 %v1671, 0.0
        %v1675 = vld [vmem:[%s838] sm:$0xf]
        %v1676 = vld [vmem:[%s838 + $0x4] sm:$0xf]
        %v1677 = vld [vmem:[%s838 + $0x8] sm:$0xf]
        %v1678 = vld [vmem:[%s838 + $0xc] sm:$0xf]
        %v1679 = vld [vmem:[%s838 + $0x10] sm:$0xf]
        %v1680 = vld [vmem:[%s838 + $0x14] sm:$0xf]
        %v1681 = vld [vmem:[%s838 + $0x18] sm:$0xf]
        %v1682 = vld [vmem:[%s838 + $0x1c] sm:$0xf]
        %v1683 = vpack.c.bf16 %v1674, %v1673
        %v1684 = vld [vmem:[%s841] sm:$0x1]
        %v1686 = vperm.slane %v1684, 0
        %v1696 = vunpack.c.l.b16 %v1675
        %v1697 = vunpack.c.l.b16 %v1676
        %v1698 = vunpack.c.l.b16 %v1677
        %v1699 = vunpack.c.l.b16 %v1678
        %v1700 = vunpack.c.l.b16 %v1679
        %v1701 = vunpack.c.l.b16 %v1680
        %v1702 = vunpack.c.l.b16 %v1681
        %v1703 = vunpack.c.l.b16 %v1682
        %v1704 = vpack.c.b16 %v1697, %v1696
        %v1705 = vpack.c.b16 %v1699, %v1698
        %v1706 = vpack.c.b16 %v1701, %v1700
        %v1707 = vpack.c.b16 %v1703, %v1702
        %vm1712 = vcmask 523264
        %v1714 = vsel %vm1712, %v1683, 0
        %1716 = vmatpush.bf16.msra.mxu0 0
        %1717 = vmatpush.bf16.msra.mxu0 0
        %1718 = vmatpush.bf16.msra.mxu0 0
        %1719 = vmatpush.bf16.msra.mxu0 0
        %1720 = vmatpush.bf16.msra.mxu0 %v1707
        %1721 = vmatpush.bf16.msra.mxu0 %v1706
        %1722 = vmatpush.bf16.msra.mxu0 %v1705
        %1723 = vmatpush.bf16.msra.mxu0 %v1704
        %1724 = vmatmul.bf16.gmra.mxu0 %v1714
        %v1725 = vpop.f32.mrf.mxu0
        %v1726 = vadd.f32 %v1686, %v1725
        %v1727 = vpop.f32.mrf.mxu0
        %v1728 = vadd.f32 %v1686, %v1727
        %1729 = vdwg.mxu0
        %v1730 = vadd.f32 %v1633, %v1726
        %v1731 = vadd.f32 %v1634, %v1728
        %v1732 = vld [vmem:[%s850] sm:$0x1]
        %v1733 = vld [vmem:[%s853] sm:$0x1]
        %v1734 = vsel %vm888, %v1730, 0.0
        %1735 = vadd.xlane.f32.xlu0 %v1734
        %v1736 = vpop.xlane.xlu0 %1735
        %v1737 = vsel %vm888, %v1731, 0.0
        %1738 = vadd.xlane.f32.xlu0 %v1737
        %v1739 = vpop.xlane.xlu0 %1738
        %v1740 = vmul.f32 %v1736, %v1586
        %v1741 = vmul.f32 %v1739, %v1586
        %v1742 = vsub.f32 %v1730, %v1740
        %v1743 = vsub.f32 %v1731, %v1741
        %v1744 = vmul.f32 %v1742, %v1742
        %v1745 = vmul.f32 %v1743, %v1743
        %v1746 = vsel %vm888, %v1744, 0.0
        %1747 = vadd.xlane.f32.xlu0 %v1746
        %v1748 = vpop.xlane.xlu0 %1747
        %v1749 = vsel %vm888, %v1745, 0.0
        %1750 = vadd.xlane.f32.xlu0 %v1749
        %v1751 = vpop.xlane.xlu0 %1750
        %v1752 = vmul.f32 %v1748, %v1586
        %v1753 = vmul.f32 %v1751, %v1586
        %v1754 = vadd.f32 %v1752, 1e-05
        %v1755 = vadd.f32 %v1753, 1e-05
        %v1756 = vrsqrt.pop %v1754
        %v1757 = vmul.f32 %v1756, %v1754
        %v1758 = vmul.f32 %v1757, %v1756
        %v1759 = vmul.f32 0.5, %v1758
        %v1760 = vsub.f32 1.5, %v1759
        %v1761 = vmul.f32 %v1756, %v1760
        %vm1762 = vweird.f32 %v1754
        %vm1763 = vweird.f32 %v1756
        %vm1764 = vmor %vm1762, %vm1763
        %v1765 = vsel %vm1764, %v1756, %v1761
        %v1766 = vrsqrt.pop %v1755
        %v1767 = vmul.f32 %v1766, %v1755
        %v1768 = vmul.f32 %v1767, %v1766
        %v1769 = vmul.f32 0.5, %v1768
        %v1770 = vsub.f32 1.5, %v1769
        %v1771 = vmul.f32 %v1766, %v1770
        %vm1772 = vweird.f32 %v1755
        %vm1773 = vweird.f32 %v1766
        %vm1774 = vmor %vm1772, %vm1773
        %v1775 = vsel %vm1774, %v1766, %v1771
        %v1776 = vmul.f32 %v1742, %v1765
        %v1777 = vmul.f32 %v1743, %v1775
        %v1779 = vperm.slane %v1732, 0
        %v1781 = vmul.f32 %v1776, %v1779
        %v1782 = vmul.f32 %v1777, %v1779
        %v1784 = vperm.slane %v1733, 0
        %v1786 = vadd.f32 %v1781, %v1784
        %v1787 = vadd.f32 %v1782, %v1784
        %1788 = vst.msk [vmem:[#allocation2] sm:$0xff] %vm888, %v1786
        %1789 = vst.msk [vmem:[#allocation2 + $0x8] sm:$0xff] %vm888, %v1787
        %p1790 = scmp.eq.s32.totalorder %s38, 1
        // Predicated region
        $region109: #{vanilla_transformer_forward.1} parent=103 // pred_check
          %p1791 = pneg %p1790
        $region110: #{vanilla_transformer_forward.1} parent=103 // pred_check_branch
          %1793 = sbr.rel (%p1791) target = $region112
        $region111: #{vanilla_transformer_forward.1} parent=103 // pred_region
          %v1794 = vld [vmem:[%s13] sm:$0x1]
          %v1795 = vld [vmem:[%s14] sm:$0x1]
          %v1796 = vsel %vm888, %v1786, 0.0
          %1797 = vadd.xlane.f32.xlu0 %v1796
          %v1798 = vpop.xlane.xlu0 %1797
          %v1799 = vsel %vm888, %v1787, 0.0
          %1800 = vadd.xlane.f32.xlu0 %v1799
          %v1801 = vpop.xlane.xlu0 %1800
          %v1802 = vmul.f32 %v1798, %v1586
          %v1803 = vmul.f32 %v1801, %v1586
          %v1804 = vsub.f32 %v1786, %v1802
          %v1805 = vsub.f32 %v1787, %v1803
          %v1806 = vmul.f32 %v1804, %v1804
          %v1807 = vmul.f32 %v1805, %v1805
          %v1808 = vsel %vm888, %v1806, 0.0
          %1809 = vadd.xlane.f32.xlu0 %v1808
          %v1810 = vpop.xlane.xlu0 %1809
          %v1811 = vsel %vm888, %v1807, 0.0
          %1812 = vadd.xlane.f32.xlu0 %v1811
          %v1813 = vpop.xlane.xlu0 %1812
          %v1814 = vmul.f32 %v1810, %v1586
          %v1815 = vmul.f32 %v1813, %v1586
          %v1816 = vadd.f32 %v1814, 1e-05
          %v1817 = vadd.f32 %v1815, 1e-05
          %v1818 = vrsqrt.pop %v1816
          %v1819 = vmul.f32 %v1818, %v1816
          %v1820 = vmul.f32 %v1819, %v1818
          %v1821 = vmul.f32 0.5, %v1820
          %v1822 = vsub.f32 1.5, %v1821
          %v1823 = vmul.f32 %v1818, %v1822
          %vm1824 = vweird.f32 %v1816
          %vm1825 = vweird.f32 %v1818
          %vm1826 = vmor %vm1824, %vm1825
          %v1827 = vsel %vm1826, %v1818, %v1823
          %v1828 = vrsqrt.pop %v1817
          %v1829 = vmul.f32 %v1828, %v1817
          %v1830 = vmul.f32 %v1829, %v1828
          %v1831 = vmul.f32 0.5, %v1830
          %v1832 = vsub.f32 1.5, %v1831
          %v1833 = vmul.f32 %v1828, %v1832
          %vm1834 = vweird.f32 %v1817
          %vm1835 = vweird.f32 %v1828
          %vm1836 = vmor %vm1834, %vm1835
          %v1837 = vsel %vm1836, %v1828, %v1833
          %v1838 = vmul.f32 %v1804, %v1827
          %v1839 = vmul.f32 %v1805, %v1837
          %v1841 = vperm.slane %v1794, 0
          %v1843 = vmul.f32 %v1838, %v1841
          %v1844 = vmul.f32 %v1839, %v1841
          %v1846 = vperm.slane %v1795, 0
          %v1848 = vadd.f32 %v1843, %v1846
          %v1849 = vadd.f32 %v1844, %v1846
          %v1850 = vsel %vm888, %v1848, 0.0
          %v1851 = vrot.slane %v1850, 4
          %v1852 = vadd.f32 %v1850, %v1851
          %v1853 = vrot.slane %v1852, 2
          %v1854 = vadd.f32 %v1852, %v1853
          %v1855 = vrot.slane %v1854, 1
          %v1856 = vadd.f32 %v1854, %v1855
          %v1857 = vsel %vm888, %v1849, 0.0
          %v1858 = vrot.slane %v1857, 4
          %v1859 = vadd.f32 %v1857, %v1858
          %v1860 = vrot.slane %v1859, 2
          %v1861 = vadd.f32 %v1859, %v1860
          %v1862 = vrot.slane %v1861, 1
          %v1863 = vadd.f32 %v1861, %v1862
          %v1864 = vrcp.pop 8.0
          %v1865 = vmul.f32 8.0, %v1864
          %v1866 = vsub.f32 1.0, %v1865
          %v1867 = vmul.f32 %v1864, %v1866
          %v1868 = vadd.f32 %v1864, %v1867
          %vm1869 = vweird.f32 %v1864
          %v1870 = vsel %vm1869, %v1864, %v1868
          %v1871 = vmul.f32 %v1856, %v1870
          %v1872 = vmul.f32 %v1863, %v1870
          %v1873 = vld [vmem:[%s15] sm:$0xf]
          %v1874 = vld [vmem:[%s15 + $0x4] sm:$0xf]
          %v1875 = vld [vmem:[%s15 + $0x8] sm:$0xf]
          %v1876 = vld [vmem:[%s15 + $0xc] sm:$0xf]
          %v1877 = vpack.c.bf16 %v1871, %v1871
          %v1878 = vpack.c.bf16 %v1872, %v1872
          %v1879 = vld [vmem:[%s16] sm:$0x1]
          %v1881 = vperm.slane %v1879, 0
          %v1885 = vunpack.c.l.b16 %v1877
          %v1886 = vunpack.c.l.b16 %v1878
          %vm1887 = vcmask 1041409
          %v1888 = vsel %vm1887, %v1886, %v1885
          %v1889 = vpack.c.b16 %v1888, %v1888
          %v1894 = vunpack.c.l.b16 %v1873
          %v1895 = vunpack.c.l.b16 %v1874
          %v1896 = vunpack.c.l.b16 %v1875
          %v1897 = vunpack.c.l.b16 %v1876
          %v1898 = vpack.c.b16 %v1895, %v1894
          %v1899 = vpack.c.b16 %v1897, %v1896
          %v1903 = vsel %vm888, %v1889, 0
          %1905 = vmatpush.bf16.msra.mxu0 0
          %1906 = vmatpush.bf16.msra.mxu0 0
          %1907 = vmatpush.bf16.msra.mxu0 0
          %1908 = vmatpush.bf16.msra.mxu0 0
          %1909 = vmatpush.bf16.msra.mxu0 0
          %1910 = vmatpush.bf16.msra.mxu0 0
          %1911 = vmatpush.bf16.msra.mxu0 %v1899
          %1912 = vmatpush.bf16.msra.mxu0 %v1898
          %1913 = vmatmul.bf16.gmra.mxu0 %v1903
          %v1914 = vpop.f32.mrf.mxu0
          %v1915 = vadd.f32 %v1881, %v1914
          %v1916 = vpop.f32.mrf.mxu0
          %1917 = vdwg.mxu0
          %v1918 = vmax.f32 %v1915, 0.0
          %v1919 = vld [vmem:[%s17] sm:$0xf]
          %v1920 = vld [vmem:[%s17 + $0x4] sm:$0xf]
          %v1921 = vpack.c.bf16 %v1918, %v1918
          %v1922 = vld [vmem:[%s18] sm:$0x1]
          %v1924 = vperm.slane %v1922, 0
          %v1928 = vunpack.c.l.b16 %v1919
          %v1929 = vunpack.c.l.b16 %v1920
          %v1930 = vpack.c.b16 %v1929, %v1928
          %vm1932 = vcmask 130048
          %v1934 = vsel %vm1932, %v1921, 0
          %1936 = vmatpush.bf16.msra.mxu0 0
          %1937 = vmatpush.bf16.msra.mxu0 0
          %1938 = vmatpush.bf16.msra.mxu0 0
          %1939 = vmatpush.bf16.msra.mxu0 0
          %1940 = vmatpush.bf16.msra.mxu0 0
          %1941 = vmatpush.bf16.msra.mxu0 0
          %1942 = vmatpush.bf16.msra.mxu0 0
          %1943 = vmatpush.bf16.msra.mxu0 %v1930
          %1944 = vmatmul.bf16.gmra.mxu0 %v1934
          %v1945 = vpop.f32.mrf.mxu0
          %v1946 = vadd.f32 %v1924, %v1945
          %v1947 = vpop.f32.mrf.mxu0
          %1948 = vdwg.mxu0
          %v1949 = vmax.f32 %v1946, 0.0
          %v1950 = vld [vmem:[%s19] sm:$0xf]
          %v1951 = vpack.c.bf16 %v1949, %v1949
          %v1952 = vld [vmem:[%s20] sm:$0x1]
          %v1954 = vperm.slane %v1952, 0
          %v1957 = vsel %vm913, %v1951, 0
          %v1960 = vsel %vm1014, %v1950, 0
          %1962 = vmatpush.bf16.msra.mxu0 0
          %1963 = vmatpush.bf16.msra.mxu0 0
          %1964 = vmatpush.bf16.msra.mxu0 0
          %1965 = vmatpush.bf16.msra.mxu0 0
          %1966 = vmatpush.bf16.msra.mxu0 0
          %1967 = vmatpush.bf16.msra.mxu0 0
          %1968 = vmatpush.bf16.msra.mxu0 0
          %1969 = vmatpush.bf16.msra.mxu0 %v1960
          %1970 = vmatmul.bf16.gmra.mxu0 %v1957
          %v1971 = vpop.f32.mrf.mxu0
          %v1972 = vadd.f32 %v1954, %v1971
          %v1973 = vpop.f32.mrf.mxu0
          %1974 = vdwg.mxu0
          %v1976 = vrot.slane %v1972, 1
          %1978 = vst [vmem:[#allocation3] sm:$0x1] %v1972
          %1979 = vst [vmem:[#allocation3 + $0x1] sm:$0x1] %v1976
        $region112: #{vanilla_transformer_forward.1} parent=103 // pred_fallthru
          _
        // Predicated region
        $region113: #{vanilla_transformer_forward.1} parent=103 // pred_check
          %p1980 = pneg %p569
        $region114: #{vanilla_transformer_forward.1} parent=103 // pred_check_branch
          %1982 = sbr.rel (%p1980) target = $region116
        $region115: #{vanilla_transformer_forward.1} parent=103 // pred_region
          %s1983 = smul.u32 2, %s37
          %1985 = vsyncadd [#allocation4], 0
          %s1986 = scalar_lea.hbm %s21, %s1983
          %s1987 = sshll.u32 [#allocation3], 4
          %s1988 = int_to_ptr.vmem [resolvable:$true] %s1987
          %s1989 = sshll.u32 %s1986, 4
          %s1990 = int_to_ptr.hbm [resolvable:$true] %s1989
          %1995 = dma.vmem_to_hbm [thread:$0]  %s1988, 32, %s1990, [#allocation4], 16, 16, 1
        $region116: #{vanilla_transformer_forward.1} parent=103 // pred_fallthru
          _
        // Predicated region
        $region117: #{vanilla_transformer_forward.1} parent=103 // pred_check
          %p1996 = pneg %p569
        $region118: #{vanilla_transformer_forward.1} parent=103 // pred_check_branch
          %1998 = sbr.rel (%p1996) target = $region120
        $region119: #{vanilla_transformer_forward.1} parent=103 // pred_region
          %2000 = dma.done [#allocation4], 32
        $region120: #{vanilla_transformer_forward.1} parent=103 // pred_fallthru
          _
      $region104: #{vanilla_transformer_forward.1} parent=5 // pred_fallthru
        _
      %p2001 = scmp.le.s32.totalorder 2, %s28
      // Predicated region
      $region121: #{vanilla_transformer_forward.1} parent=5 // pred_check
        %p2002 = pneg %p2001
      $region122: #{vanilla_transformer_forward.1} parent=5 // pred_check_branch
        %2004 = sbr.rel (%p2002) target = $region124
      $region123: #{vanilla_transformer_forward.1} parent=5 // pred_region
        %s2005 = ssub.s32 %s28, 2
      $region124: #{vanilla_transformer_forward.1} parent=5 // pred_fallthru
        _
    $region6: #{vanilla_transformer_forward.1} parent=1 // loop_footer
      %s32 = sadd.s32 1, %s28
    $region7: #{vanilla_transformer_forward.1} parent=1 // loop_footer_branch
      %27 = sbr.rel target = $region3
    $region8: #{vanilla_transformer_forward.1} parent=1 // loop_exit
      _
    %2006 = vsyncpa [#allocation4], 1
    %s2007 = scalar_lea.sflag [#allocation4], 1
    %2008 = vsyncpa %s2007, 1

</llo_original>
